<compile_context>
chip_gen: v5e
topology: v5e:2x2
jax: 0.10.0
libtpu: 0.0.40
codegen_flags: <defaults>
</compile_context>

<pallas_src>
import jax
import jax.numpy as jnp
from jax.experimental import pallas as pl
from jax.experimental.pallas import tpu as pltpu

IN_DIM = 4
HIDDEN = 128
OUT_DIM = 2
NEG_SLOPE = 0.01  # torch nn.LeakyReLU default


def actor_kernel(xt_ref, w1_ref, b1_ref, w2_ref, b2_ref, w3d_ref, b3d_ref, o_ref):
    # xt_ref : (4, TB)   f32, batch on lanes (lane-dense input)
    # w1_ref : (128, 4)  f32   b1_ref: (128, 1) f32
    # w2_ref : (128,128) bf16  b2_ref: (128, 1) f32
    # w3d_ref: (1, 128)  f32 = w3[0] - w3[1]   b3d_ref: (1, 1) f32 = b3[0] - b3[1]
    # o_ref  : (2, TB)   f32, batch on lanes (lane-dense output)
    xt = xt_ref[...]
    w1 = w1_ref[...]

    # Layer 1: Linear(4 -> 128) as 4 broadcast FMAs on the VPU (a K=4 MXU pass
    # would waste ~97% of the contraction).  Bias folded into the first FMA.
    h1 = w1[:, 0:1] * xt[0:1, :] + b1_ref[...]            # (128,1)*(1,TB)+(128,1)
    for k in range(1, IN_DIM):
        h1 = h1 + w1[:, k:k + 1] * xt[k:k + 1, :]
    h1 = jnp.maximum(h1, NEG_SLOPE * h1)                   # LeakyReLU

    # Layer 2: Linear(128 -> 128) on the MXU, bf16 inputs, f32 accumulation.
    h2 = jnp.dot(w2_ref[...], h1.astype(jnp.bfloat16),
                 preferred_element_type=jnp.float32) + b2_ref[...]
    h2 = jnp.maximum(h2, NEG_SLOPE * h2)                    # LeakyReLU

    # Layer 3 + softmax: with 2 classes, softmax == sigmoid of the logit
    # difference, so contract against (w3[0]-w3[1]) only (one MXU row) and
    # route the epilogue through the EUP (exp + approx reciprocal).
    d = jnp.dot(w3d_ref[...].astype(jnp.bfloat16), h2.astype(jnp.bfloat16),
                preferred_element_type=jnp.float32) + b3d_ref[...]   # (1, TB)
    d = jnp.clip(d, -60.0, 60.0)                            # keep exp finite
    p0 = pl.reciprocal(1.0 + jnp.exp(-d), approx=True)      # sigmoid(l0 - l1)
    probs = jnp.concatenate([p0, 1.0 - p0], axis=0)         # (2, TB), sums to 1
    o_ref[...] = probs.astype(o_ref.dtype)


def _tiling(batch, max_tb=2048):
    """Choose (padded_batch, batch_tile): lane-multiple tiles, >=2 grid steps
    whenever possible (v7x megacore), tiles capped at max_tb."""
    bp = ((batch + 127) // 128) * 128
    if bp <= 128:
        return bp, bp                       # single 128-wide step; can't split
    tb = min(max_tb, ((bp // 2 + 127) // 128) * 128)
    bp = ((bp + tb - 1) // tb) * tb
    return bp, tb


@jax.jit
def actor_forward(x, params):
    """x: (B, 4) float32. params in torch layout (W: (out, in), b: (out,)).
    Returns softmax action probabilities of shape (B, 2)."""
    w1, b1, w2, b2, w3, b3 = params
    B = x.shape[0]
    bp, tb = _tiling(B)
    grid = (bp // tb,)

    # Transposed, lane-dense layout: batch on the lane (last) axis.  Explicit
    # zero padding keeps the discarded columns' sigmoid finite.
    xt = jnp.zeros((IN_DIM, bp), jnp.float32).at[:, :B].set(x.T)
    b1c = b1.reshape(HIDDEN, 1).astype(jnp.float32)
    b2c = b2.reshape(HIDDEN, 1).astype(jnp.float32)
    w2bf = w2.astype(jnp.bfloat16)                              # bf16 MXU weight
    w3d = (w3[0] - w3[1]).reshape(1, HIDDEN).astype(jnp.float32)
    b3d = (b3[0] - b3[1]).reshape(1, 1).astype(jnp.float32)

    const = lambda i: (0, 0)  # weights/biases stay VMEM-resident across steps
    out_t = pl.pallas_call(
        actor_kernel,
        out_shape=jax.ShapeDtypeStruct((OUT_DIM, bp), jnp.float32),
        grid=grid,
        in_specs=[
            pl.BlockSpec((IN_DIM, tb), lambda i: (0, i)),   # X^T, tiled over batch
            pl.BlockSpec((HIDDEN, IN_DIM), const),          # W1 (128, 4) f32
            pl.BlockSpec((HIDDEN, 1), const),               # b1
            pl.BlockSpec((HIDDEN, HIDDEN), const),          # W2 (128, 128) bf16
            pl.BlockSpec((HIDDEN, 1), const),               # b2
            pl.BlockSpec((1, HIDDEN), const),               # w3[0]-w3[1]
            pl.BlockSpec((1, 1), const),                    # b3[0]-b3[1]
        ],
        out_specs=pl.BlockSpec((OUT_DIM, tb), lambda i: (0, i)),
        compiler_params=pltpu.CompilerParams(
            dimension_semantics=("parallel",)),             # megacore sharding on v7x
    )(xt, w1, b1c, w2bf, b2c, w3d, b3d)

    return out_t[:, :B].T                                   # back to (B, 2)


def init_params(key):
    """Deterministic init, torch nn.Linear layout: W (out, in), b (out,)."""
    ks = jax.random.split(key, 6)

    def uni(k, shape, fan_in):
        bound = 1.0 / jnp.sqrt(fan_in)
        return jax.random.uniform(k, shape, jnp.float32, -bound, bound)

    w1 = uni(ks[0], (HIDDEN, IN_DIM), float(IN_DIM))
    b1 = uni(ks[1], (HIDDEN,), float(IN_DIM))
    w2 = uni(ks[2], (HIDDEN, HIDDEN), float(HIDDEN))
    b2 = uni(ks[3], (HIDDEN,), float(HIDDEN))
    w3 = uni(ks[4], (OUT_DIM, HIDDEN), float(HIDDEN))
    b3 = uni(ks[5], (OUT_DIM,), float(HIDDEN))
    return (w1, b1, w2, b2, w3, b3)


def actor_reference(x, params):
    """Pure-JAX f32 reference with torch semantics (x @ W.T + b)."""
    w1, b1, w2, b2, w3, b3 = params
    h1 = x @ w1.T + b1
    h1 = jnp.where(h1 > 0, h1, NEG_SLOPE * h1)
    h2 = h1 @ w2.T + b2
    h2 = jnp.where(h2 > 0, h2, NEG_SLOPE * h2)
    logits = h2 @ w3.T + b3
    return jax.nn.softmax(logits, axis=-1)


if __name__ == "__main__":
    key = jax.random.PRNGKey(0)
    kx, kp = jax.random.split(key)
    params = init_params(kp)

    # Main case: non-multiple of the tile -> exercises padding + a 2-step
    # "parallel" batch grid (both TCs on v7x).
    B = 1000
    x = jax.random.normal(kx, (B, IN_DIM), jnp.float32)
    out = jax.block_until_ready(actor_forward(x, params))
    ref = actor_reference(x, params)
    assert out.shape == (B, OUT_DIM)
    # bf16 MXU inputs + approx reciprocal => loosened tolerance on probabilities.
    assert jnp.allclose(out, ref, atol=2e-2, rtol=2e-2)
    assert jnp.allclose(jnp.sum(out, axis=-1), 1.0, atol=1e-5)

    # Small-batch case: single 128-wide padded tile.
    xs = jax.random.normal(jax.random.PRNGKey(1), (8, IN_DIM), jnp.float32)
    outs = jax.block_until_ready(actor_forward(xs, params))
    refs = actor_reference(xs, params)
    assert outs.shape == (8, OUT_DIM)
    assert jnp.allclose(outs, refs, atol=2e-2, rtol=2e-2)

    print("KERNEL_OK")
</pallas_src>

<mosaic_0001>
module attributes {stable_mosaic.version = 11 : i64} {
  func.func @actor_kernel(%arg0: i32, %arg1: memref<4x512xf32, #tpu.memory_space<vmem>>, %arg2: memref<128x4xf32, #tpu.memory_space<vmem>>, %arg3: memref<128x1xf32, #tpu.memory_space<vmem>>, %arg4: memref<128x128xbf16, #tpu.memory_space<vmem>>, %arg5: memref<128x1xf32, #tpu.memory_space<vmem>>, %arg6: memref<1x128xf32, #tpu.memory_space<vmem>>, %arg7: memref<1x1xf32, #tpu.memory_space<vmem>>, %arg8: memref<2x512xf32, #tpu.memory_space<vmem>>) attributes {dimension_semantics = [#tpu.dimension_semantics<parallel>], iteration_bounds = array<i64: 2>, scalar_prefetch = 0 : i64, scratch_operands = 0 : i64, tpu.core_type = #tpu.core_type<tc>, window_params = [{transform_indices = @transform_0, window_bounds = array<i64: 4, 512>}, {pipeline_mode = #tpu.pipeline_mode<synchronous>, transform_indices = @transform_1, window_bounds = array<i64: 128, 4>}, {pipeline_mode = #tpu.pipeline_mode<synchronous>, transform_indices = @transform_2, window_bounds = array<i64: 128, 1>}, {pipeline_mode = #tpu.pipeline_mode<synchronous>, transform_indices = @transform_3, window_bounds = array<i64: 128, 128>}, {pipeline_mode = #tpu.pipeline_mode<synchronous>, transform_indices = @transform_4, window_bounds = array<i64: 128, 1>}, {pipeline_mode = #tpu.pipeline_mode<synchronous>, transform_indices = @transform_5, window_bounds = array<i64: 1, 128>}, {pipeline_mode = #tpu.pipeline_mode<synchronous>, transform_indices = @transform_6, window_bounds = array<i64: 1, 1>}, {transform_indices = @transform_7, window_bounds = array<i64: 2, 512>}]} {
    %c0 = arith.constant 0 : index
    %c0_0 = arith.constant 0 : index
    %0 = vector.load %arg1[%c0, %c0_0] : memref<4x512xf32, #tpu.memory_space<vmem>>, vector<4x512xf32>
    %c0_1 = arith.constant 0 : index
    %c0_2 = arith.constant 0 : index
    %1 = vector.load %arg2[%c0_1, %c0_2] : memref<128x4xf32, #tpu.memory_space<vmem>>, vector<128x4xf32>
    %2 = vector.extract_strided_slice %1 {offsets = [0, 0], sizes = [128, 1], strides = [1, 1]} : vector<128x4xf32> to vector<128x1xf32>
    %3 = vector.extract_strided_slice %0 {offsets = [0, 0], sizes = [1, 512], strides = [1, 1]} : vector<4x512xf32> to vector<1x512xf32>
    %4 = vector.broadcast %2 : vector<128x1xf32> to vector<128x512xf32>
    %5 = vector.broadcast %3 : vector<1x512xf32> to vector<128x512xf32>
    %6 = arith.mulf %4, %5 : vector<128x512xf32>
    %c0_3 = arith.constant 0 : index
    %c0_4 = arith.constant 0 : index
    %7 = vector.load %arg3[%c0_3, %c0_4] : memref<128x1xf32, #tpu.memory_space<vmem>>, vector<128x1xf32>
    %8 = vector.broadcast %7 : vector<128x1xf32> to vector<128x512xf32>
    %9 = arith.addf %6, %8 : vector<128x512xf32>
    %10 = vector.extract_strided_slice %1 {offsets = [0, 1], sizes = [128, 1], strides = [1, 1]} : vector<128x4xf32> to vector<128x1xf32>
    %11 = vector.extract_strided_slice %0 {offsets = [1, 0], sizes = [1, 512], strides = [1, 1]} : vector<4x512xf32> to vector<1x512xf32>
    %12 = vector.broadcast %10 : vector<128x1xf32> to vector<128x512xf32>
    %13 = vector.broadcast %11 : vector<1x512xf32> to vector<128x512xf32>
    %14 = arith.mulf %12, %13 : vector<128x512xf32>
    %15 = arith.addf %9, %14 : vector<128x512xf32>
    %16 = vector.extract_strided_slice %1 {offsets = [0, 2], sizes = [128, 1], strides = [1, 1]} : vector<128x4xf32> to vector<128x1xf32>
    %17 = vector.extract_strided_slice %0 {offsets = [2, 0], sizes = [1, 512], strides = [1, 1]} : vector<4x512xf32> to vector<1x512xf32>
    %18 = vector.broadcast %16 : vector<128x1xf32> to vector<128x512xf32>
    %19 = vector.broadcast %17 : vector<1x512xf32> to vector<128x512xf32>
    %20 = arith.mulf %18, %19 : vector<128x512xf32>
    %21 = arith.addf %15, %20 : vector<128x512xf32>
    %22 = vector.extract_strided_slice %1 {offsets = [0, 3], sizes = [128, 1], strides = [1, 1]} : vector<128x4xf32> to vector<128x1xf32>
    %23 = vector.extract_strided_slice %0 {offsets = [3, 0], sizes = [1, 512], strides = [1, 1]} : vector<4x512xf32> to vector<1x512xf32>
    %24 = vector.broadcast %22 : vector<128x1xf32> to vector<128x512xf32>
    %25 = vector.broadcast %23 : vector<1x512xf32> to vector<128x512xf32>
    %26 = arith.mulf %24, %25 : vector<128x512xf32>
    %27 = arith.addf %21, %26 : vector<128x512xf32>
    %cst = arith.constant 0.00999999977 : f32
    %28 = vector.broadcast %cst : f32 to vector<128x512xf32>
    %29 = arith.mulf %28, %27 : vector<128x512xf32>
    %30 = arith.maximumf %27, %29 : vector<128x512xf32>
    %c0_5 = arith.constant 0 : index
    %c0_6 = arith.constant 0 : index
    %31 = vector.load %arg4[%c0_5, %c0_6] : memref<128x128xbf16, #tpu.memory_space<vmem>>, vector<128x128xbf16>
    %32 = arith.truncf %30 : vector<128x512xf32> to vector<128x512xbf16>
    %cst_7 = arith.constant dense<0.000000e+00> : vector<128x512xf32>
    %33 = tpu.matmul %31, %32, %cst_7 {dimension_numbers = #tpu.dot_dimension_numbers<[1], [0], [0], [1], [0, 0, 1, 1], [], []>} : vector<128x128xbf16>, vector<128x512xbf16>, vector<128x512xf32> -> vector<128x512xf32>
    %c0_8 = arith.constant 0 : index
    %c0_9 = arith.constant 0 : index
    %34 = vector.load %arg5[%c0_8, %c0_9] : memref<128x1xf32, #tpu.memory_space<vmem>>, vector<128x1xf32>
    %35 = vector.broadcast %34 : vector<128x1xf32> to vector<128x512xf32>
    %36 = arith.addf %33, %35 : vector<128x512xf32>
    %cst_10 = arith.constant 0.00999999977 : f32
    %37 = vector.broadcast %cst_10 : f32 to vector<128x512xf32>
    %38 = arith.mulf %37, %36 : vector<128x512xf32>
    %39 = arith.maximumf %36, %38 : vector<128x512xf32>
    %c0_11 = arith.constant 0 : index
    %c0_12 = arith.constant 0 : index
    %40 = vector.load %arg6[%c0_11, %c0_12] : memref<1x128xf32, #tpu.memory_space<vmem>>, vector<1x128xf32>
    %41 = arith.truncf %40 : vector<1x128xf32> to vector<1x128xbf16>
    %42 = arith.truncf %39 : vector<128x512xf32> to vector<128x512xbf16>
    %cst_13 = arith.constant dense<0.000000e+00> : vector<1x512xf32>
    %43 = tpu.matmul %41, %42, %cst_13 {dimension_numbers = #tpu.dot_dimension_numbers<[1], [0], [0], [1], [0, 0, 1, 1], [], []>} : vector<1x128xbf16>, vector<128x512xbf16>, vector<1x512xf32> -> vector<1x512xf32>
    %c0_14 = arith.constant 0 : index
    %c0_15 = arith.constant 0 : index
    %44 = vector.load %arg7[%c0_14, %c0_15] : memref<1x1xf32, #tpu.memory_space<vmem>>, vector<1x1xf32>
    %45 = vector.broadcast %44 : vector<1x1xf32> to vector<1x512xf32>
    %46 = arith.addf %43, %45 : vector<1x512xf32>
    %cst_16 = arith.constant -6.000000e+01 : f32
    %cst_17 = arith.constant 6.000000e+01 : f32
    %47 = vector.broadcast %cst_16 : f32 to vector<1x512xf32>
    %48 = arith.maximumf %47, %46 : vector<1x512xf32>
    %49 = vector.broadcast %cst_17 : f32 to vector<1x512xf32>
    %50 = arith.minimumf %49, %48 : vector<1x512xf32>
    %cst_18 = arith.constant 0.000000e+00 : f32
    %51 = vector.broadcast %cst_18 : f32 to vector<1x512xf32>
    %52 = arith.subf %51, %50 : vector<1x512xf32>
    %53 = math.exp %52 : vector<1x512xf32>
    %cst_19 = arith.constant 1.000000e+00 : f32
    %54 = vector.broadcast %cst_19 : f32 to vector<1x512xf32>
    %55 = arith.addf %54, %53 : vector<1x512xf32>
    %56 = tpu.reciprocal %55 {approx = true} : vector<1x512xf32> -> vector<1x512xf32>
    %cst_20 = arith.constant 1.000000e+00 : f32
    %57 = vector.broadcast %cst_20 : f32 to vector<1x512xf32>
    %58 = arith.subf %57, %56 : vector<1x512xf32>
    %59 = tpu.concatenate %56, %58 in 0 : vector<1x512xf32>, vector<1x512xf32> -> vector<2x512xf32>
    %c0_21 = arith.constant 0 : index
    %c0_22 = arith.constant 0 : index
    %60 = vector.load %arg8[%c0_21, %c0_22] : memref<2x512xf32, #tpu.memory_space<vmem>>, vector<2x512xf32>
    tpu.vector_store %arg8[%c0_21, %c0_22], %59 {strides = array<i32>} : memref<2x512xf32, #tpu.memory_space<vmem>>, vector<2x512xf32>,
    return
  }
  func.func @transform_0(%arg0: i32) -> (i32, i32) {
    %c0_i32 = arith.constant 0 : i32
    %c0_i32_0 = arith.constant 0 : i32
    return %c0_i32, %arg0 : i32, i32
  }
  func.func @transform_1(%arg0: i32) -> (i32, i32) {
    %c0_i32 = arith.constant 0 : i32
    %c0_i32_0 = arith.constant 0 : i32
    %c0_i32_1 = arith.constant 0 : i32
    return %c0_i32, %c0_i32_0 : i32, i32
  }
  func.func @transform_2(%arg0: i32) -> (i32, i32) {
    %c0_i32 = arith.constant 0 : i32
    %c0_i32_0 = arith.constant 0 : i32
    %c0_i32_1 = arith.constant 0 : i32
    return %c0_i32, %c0_i32_0 : i32, i32
  }
  func.func @transform_3(%arg0: i32) -> (i32, i32) {
    %c0_i32 = arith.constant 0 : i32
    %c0_i32_0 = arith.constant 0 : i32
    %c0_i32_1 = arith.constant 0 : i32
    return %c0_i32, %c0_i32_0 : i32, i32
  }
  func.func @transform_4(%arg0: i32) -> (i32, i32) {
    %c0_i32 = arith.constant 0 : i32
    %c0_i32_0 = arith.constant 0 : i32
    %c0_i32_1 = arith.constant 0 : i32
    return %c0_i32, %c0_i32_0 : i32, i32
  }
  func.func @transform_5(%arg0: i32) -> (i32, i32) {
    %c0_i32 = arith.constant 0 : i32
    %c0_i32_0 = arith.constant 0 : i32
    %c0_i32_1 = arith.constant 0 : i32
    return %c0_i32, %c0_i32_0 : i32, i32
  }
  func.func @transform_6(%arg0: i32) -> (i32, i32) {
    %c0_i32 = arith.constant 0 : i32
    %c0_i32_0 = arith.constant 0 : i32
    %c0_i32_1 = arith.constant 0 : i32
    return %c0_i32, %c0_i32_0 : i32, i32
  }
  func.func @transform_7(%arg0: i32) -> (i32, i32) {
    %c0_i32 = arith.constant 0 : i32
    %c0_i32_0 = arith.constant 0 : i32
    return %c0_i32, %arg0 : i32, i32
  }
}

</mosaic_0001>

<llo_original>
// kernel: actor_forward.1
$region0: #{actor_forward.1}
  #allocation0 [shape = 'u32[]', space=smem, size = 0x4, offset = 0x4, fixed_abs, tag = 'smem constant byte address 0x4 - core index']
  #allocation1 [shape = 'u32[72,128]{1,0:T(1,128)}', space=vmem, size = 0x9000, scoped, tag = 'internal scratch']
  #allocation2 [shape = 'f32[1,1]{1,0:T(1,128)S(1)}', space=vmem, size = 0x200, scoped, tag = 'scoped memory for actor_forward.1']
  %s0 = inlined_call_operand.vmem [shape: f32[4,1024], index: 0, kind: input, shape index: {}]
  %s1 = inlined_call_operand.vmem [shape: f32[128,4], index: 1, kind: input, shape index: {}]
  %s2 = inlined_call_operand.vmem [shape: f32[128,1], index: 2, kind: input, shape index: {}]
  %s3 = inlined_call_operand.vmem [shape: bf16[128,128], index: 3, kind: input, shape index: {}]
  %s4 = inlined_call_operand.vmem [shape: f32[128,1], index: 4, kind: input, shape index: {}]
  %s5 = inlined_call_operand.vmem [shape: f32[1,128], index: 5, kind: input, shape index: {}]
  %s6 = inlined_call_operand.<no memory space> [shape: f32[1,1], index: 6, kind: input, shape index: {}]
  %s7 = inlined_call_operand.vmem [shape: f32[2,1024], index: 7, kind: output, shape index: {}]
  %s8 = sld [smem:[#allocation0]]
  $region61: #{actor_forward.1} parent=0
    _
  %s10 = ssub.s32 1, %s8
  %s11 = scalar_select 0, %s10, %s8
  %v12 = vstv %s6
  %13 = vst [vmem:[#allocation2] sm:$0x1] %v12
  loop: start=0, step=1, limit=4
  $region2: #{actor_forward.1} parent=0 // loop_pre_header
    _
  $region3: #{actor_forward.1} parent=0 // loop_header
    %s15 = sphi 0, %s19
    %p16 = scmp.ge.s32.totalorder %s15, 4
    %s25 = sphi 0, %s27
    %s28 = sphi 0, %s25
    %s29 = sphi 0, %s28
    %s45 = sphi 0, %s29
    %s49 = sphi 0, %s49
    %s51 = sphi 0, %s49
    %s52 = sphi 0, %s51
    %s66 = sphi 0, %s52
    %s70 = sphi 0, %s70
    %s72 = sphi 0, %s70
    %s73 = sphi 0, %s72
    %s87 = sphi 0, %s73
    %s91 = sphi 0, %s91
    %s93 = sphi 0, %s91
    %s94 = sphi 0, %s93
    %s108 = sphi 0, %s94
    %s112 = sphi 0, %s112
    %s114 = sphi 0, %s112
    %s115 = sphi 0, %s114
    %s129 = sphi 0, %s115
    %s133 = sphi 0, %s133
    %s135 = sphi 0, %s133
    %s136 = sphi 0, %s135
    %s150 = sphi 0, %s136
    %s154 = sphi 0, %s154
    %s156 = sphi 0, %s154
    %s157 = sphi 0, %s156
    %s171 = sphi 0, %s157
    %s177 = sphi 0, %s179
    %s180 = sphi 0, %s177
    %s181 = sphi 0, %s180
    %s197 = sphi 0, %s181
  $region4: #{actor_forward.1} parent=0 // loop_header_branch
    %18 = sbr.rel (%p16) target = $region8
  $region5: #{actor_forward.1} parent=0 // loop_body
    %s20 = ssub.s32 %s15, 1
    %s21 = ssub.s32 %s15, 2
    %s22 = sadd.s32 %s15, 1
    %s23 = ssub.s32 %s15, %s22
    %p24 = scmp.eq.s32.totalorder %s23, 0
    %s26 = sadd.s32 %s25, 1
    %s27 = scalar_select %p24, %s25, %s26
    %p30 = pneg %p24
    %p31 = scmp.eq.s32.totalorder %s15, 1
    %p32 = por %p30, %p31
    %p33 = scmp.ne.s32.totalorder %s25, %s28
    %p34 = scmp.eq.s32.totalorder %s15, 0
    %p35 = por %p33, %p34
    %p36 = scmp.ne.s32.totalorder %s25, %s28
    %p37 = scmp.eq.s32.totalorder %s20, 1
    %p38 = por %p36, %p37
    %p39 = scmp.ne.s32.totalorder %s28, %s29
    %p40 = scmp.eq.s32.totalorder %s20, 0
    %p41 = por %p39, %p40
    %p42 = scmp.ne.s32.totalorder %s28, %s29
    %p43 = scmp.eq.s32.totalorder %s21, 1
    %p44 = por %p42, %p43
    %p46 = scmp.ne.s32.totalorder %s29, %s45
    %p47 = scmp.eq.s32.totalorder %s21, 0
    %p48 = por %p46, %p47
    %s50 = sadd.s32 %s49, 1
    %p53 = scmp.eq.s32.totalorder %s15, 1
    %p54 = scmp.ne.s32.totalorder %s49, %s51
    %p55 = scmp.eq.s32.totalorder %s15, 0
    %p56 = por %p54, %p55
    %p57 = scmp.ne.s32.totalorder %s49, %s51
    %p58 = scmp.eq.s32.totalorder %s20, 1
    %p59 = por %p57, %p58
    %p60 = scmp.ne.s32.totalorder %s51, %s52
    %p61 = scmp.eq.s32.totalorder %s20, 0
    %p62 = por %p60, %p61
    %p63 = scmp.ne.s32.totalorder %s51, %s52
    %p64 = scmp.eq.s32.totalorder %s21, 1
    %p65 = por %p63, %p64
    %p67 = scmp.ne.s32.totalorder %s52, %s66
    %p68 = scmp.eq.s32.totalorder %s21, 0
    %p69 = por %p67, %p68
    %s71 = sadd.s32 %s70, 1
    %p74 = scmp.eq.s32.totalorder %s15, 1
    %p75 = scmp.ne.s32.totalorder %s70, %s72
    %p76 = scmp.eq.s32.totalorder %s15, 0
    %p77 = por %p75, %p76
    %p78 = scmp.ne.s32.totalorder %s70, %s72
    %p79 = scmp.eq.s32.totalorder %s20, 1
    %p80 = por %p78, %p79
    %p81 = scmp.ne.s32.totalorder %s72, %s73
    %p82 = scmp.eq.s32.totalorder %s20, 0
    %p83 = por %p81, %p82
    %p84 = scmp.ne.s32.totalorder %s72, %s73
    %p85 = scmp.eq.s32.totalorder %s21, 1
    %p86 = por %p84, %p85
    %p88 = scmp.ne.s32.totalorder %s73, %s87
    %p89 = scmp.eq.s32.totalorder %s21, 0
    %p90 = por %p88, %p89
    %s92 = sadd.s32 %s91, 1
    %p95 = scmp.eq.s32.totalorder %s15, 1
    %p96 = scmp.ne.s32.totalorder %s91, %s93
    %p97 = scmp.eq.s32.totalorder %s15, 0
    %p98 = por %p96, %p97
    %p99 = scmp.ne.s32.totalorder %s91, %s93
    %p100 = scmp.eq.s32.totalorder %s20, 1
    %p101 = por %p99, %p100
    %p102 = scmp.ne.s32.totalorder %s93, %s94
    %p103 = scmp.eq.s32.totalorder %s20, 0
    %p104 = por %p102, %p103
    %p105 = scmp.ne.s32.totalorder %s93, %s94
    %p106 = scmp.eq.s32.totalorder %s21, 1
    %p107 = por %p105, %p106
    %p109 = scmp.ne.s32.totalorder %s94, %s108
    %p110 = scmp.eq.s32.totalorder %s21, 0
    %p111 = por %p109, %p110
    %s113 = sadd.s32 %s112, 1
    %p116 = scmp.eq.s32.totalorder %s15, 1
    %p117 = scmp.ne.s32.totalorder %s112, %s114
    %p118 = scmp.eq.s32.totalorder %s15, 0
    %p119 = por %p117, %p118
    %p120 = scmp.ne.s32.totalorder %s112, %s114
    %p121 = scmp.eq.s32.totalorder %s20, 1
    %p122 = por %p120, %p121
    %p123 = scmp.ne.s32.totalorder %s114, %s115
    %p124 = scmp.eq.s32.totalorder %s20, 0
    %p125 = por %p123, %p124
    %p126 = scmp.ne.s32.totalorder %s114, %s115
    %p127 = scmp.eq.s32.totalorder %s21, 1
    %p128 = por %p126, %p127
    %p130 = scmp.ne.s32.totalorder %s115, %s129
    %p131 = scmp.eq.s32.totalorder %s21, 0
    %p132 = por %p130, %p131
    %s134 = sadd.s32 %s133, 1
    %p137 = scmp.eq.s32.totalorder %s15, 1
    %p138 = scmp.ne.s32.totalorder %s133, %s135
    %p139 = scmp.eq.s32.totalorder %s15, 0
    %p140 = por %p138, %p139
    %p141 = scmp.ne.s32.totalorder %s133, %s135
    %p142 = scmp.eq.s32.totalorder %s20, 1
    %p143 = por %p141, %p142
    %p144 = scmp.ne.s32.totalorder %s135, %s136
    %p145 = scmp.eq.s32.totalorder %s20, 0
    %p146 = por %p144, %p145
    %p147 = scmp.ne.s32.totalorder %s135, %s136
    %p148 = scmp.eq.s32.totalorder %s21, 1
    %p149 = por %p147, %p148
    %p151 = scmp.ne.s32.totalorder %s136, %s150
    %p152 = scmp.eq.s32.totalorder %s21, 0
    %p153 = por %p151, %p152
    %s155 = sadd.s32 %s154, 1
    %p158 = scmp.eq.s32.totalorder %s15, 1
    %p159 = scmp.ne.s32.totalorder %s154, %s156
    %p160 = scmp.eq.s32.totalorder %s15, 0
    %p161 = por %p159, %p160
    %p162 = scmp.ne.s32.totalorder %s154, %s156
    %p163 = scmp.eq.s32.totalorder %s20, 1
    %p164 = por %p162, %p163
    %p165 = scmp.ne.s32.totalorder %s156, %s157
    %p166 = scmp.eq.s32.totalorder %s20, 0
    %p167 = por %p165, %p166
    %p168 = scmp.ne.s32.totalorder %s156, %s157
    %p169 = scmp.eq.s32.totalorder %s21, 1
    %p170 = por %p168, %p169
    %p172 = scmp.ne.s32.totalorder %s157, %s171
    %p173 = scmp.eq.s32.totalorder %s21, 0
    %p174 = por %p172, %p173
    %s175 = ssub.s32 %s15, %s22
    %p176 = scmp.eq.s32.totalorder %s175, 0
    %s178 = sadd.s32 %s177, 1
    %s179 = scalar_select %p176, %s177, %s178
    %p182 = pneg %p176
    %p183 = scmp.eq.s32.totalorder %s15, 1
    %p184 = por %p182, %p183
    %p185 = scmp.ne.s32.totalorder %s177, %s180
    %p186 = scmp.eq.s32.totalorder %s15, 0
    %p187 = por %p185, %p186
    %p188 = scmp.ne.s32.totalorder %s177, %s180
    %p189 = scmp.eq.s32.totalorder %s20, 1
    %p190 = por %p188, %p189
    %p191 = scmp.ne.s32.totalorder %s180, %s181
    %p192 = scmp.eq.s32.totalorder %s20, 0
    %p193 = por %p191, %p192
    %p194 = scmp.ne.s32.totalorder %s180, %s181
    %p195 = scmp.eq.s32.totalorder %s21, 1
    %p196 = por %p194, %p195
    %p198 = scmp.ne.s32.totalorder %s181, %s197
    %p199 = scmp.eq.s32.totalorder %s21, 0
    %p200 = por %p198, %p199
    %p201 = scmp.le.s32.totalorder 1, %s15
    %p202 = scmp.lt.s32.totalorder %s15, 3
    %p203 = pnand %p201, %p202
    %p204 = pneg %p203
    // Predicated region
    $region9: #{actor_forward.1} parent=5 // pred_check
      _
    $region10: #{actor_forward.1} parent=5 // pred_check_branch
      %206 = sbr.rel (%p203) target = $region12
    $region11: #{actor_forward.1} parent=5 // pred_region
      %s207 = ssub.s32 %s15, 1
      // Predicated region
      $region13: #{actor_forward.1} parent=11 // pred_check
        %p208 = pneg %p62
      $region14: #{actor_forward.1} parent=11 // pred_check_branch
        %210 = sbr.rel (%p208) target = $region16
      $region15: #{actor_forward.1} parent=11 // pred_region
        _
      $region16: #{actor_forward.1} parent=11 // pred_fallthru
        _
      // Predicated region
      $region17: #{actor_forward.1} parent=11 // pred_check
        %p211 = pneg %p83
      $region18: #{actor_forward.1} parent=11 // pred_check_branch
        %213 = sbr.rel (%p211) target = $region20
      $region19: #{actor_forward.1} parent=11 // pred_region
        _
      $region20: #{actor_forward.1} parent=11 // pred_fallthru
        _
      // Predicated region
      $region21: #{actor_forward.1} parent=11 // pred_check
        %p214 = pneg %p104
      $region22: #{actor_forward.1} parent=11 // pred_check_branch
        %216 = sbr.rel (%p214) target = $region24
      $region23: #{actor_forward.1} parent=11 // pred_region
        _
      $region24: #{actor_forward.1} parent=11 // pred_fallthru
        _
      // Predicated region
      $region25: #{actor_forward.1} parent=11 // pred_check
        %p217 = pneg %p125
      $region26: #{actor_forward.1} parent=11 // pred_check_branch
        %219 = sbr.rel (%p217) target = $region28
      $region27: #{actor_forward.1} parent=11 // pred_region
        _
      $region28: #{actor_forward.1} parent=11 // pred_fallthru
        _
      // Predicated region
      $region29: #{actor_forward.1} parent=11 // pred_check
        %p220 = pneg %p146
      $region30: #{actor_forward.1} parent=11 // pred_check_branch
        %222 = sbr.rel (%p220) target = $region32
      $region31: #{actor_forward.1} parent=11 // pred_region
        _
      $region32: #{actor_forward.1} parent=11 // pred_fallthru
        _
      // Predicated region
      $region33: #{actor_forward.1} parent=11 // pred_check
        %p223 = pneg %p167
      $region34: #{actor_forward.1} parent=11 // pred_check_branch
        %225 = sbr.rel (%p223) target = $region36
      $region35: #{actor_forward.1} parent=11 // pred_region
        _
      $region36: #{actor_forward.1} parent=11 // pred_fallthru
        _
    $region12: #{actor_forward.1} parent=5 // pred_fallthru
      _
    %p226 = scmp.lt.s32.totalorder %s15, 2
    // Predicated region
    $region37: #{actor_forward.1} parent=5 // pred_check
      %p227 = pneg %p226
    $region38: #{actor_forward.1} parent=5 // pred_check_branch
      %229 = sbr.rel (%p227) target = $region40
    $region39: #{actor_forward.1} parent=5 // pred_region
      // Predicated region
      $region41: #{actor_forward.1} parent=39 // pred_check
        %p230 = pneg %p35
      $region42: #{actor_forward.1} parent=39 // pred_check_branch
        %232 = sbr.rel (%p230) target = $region44
      $region43: #{actor_forward.1} parent=39 // pred_region
        %s233 = smul.u32 4, %s15
        %p234 = scmp.lt.s32.totalorder %s233, 7
        %s235 = scalar_select %p234, %s233, 7
        %s236 = smul.addr %s235, 4
        %s237 = scalar_lea.vmem %s0, %s236
        %s238 = smul.u32 4, %s15
      $region44: #{actor_forward.1} parent=39 // pred_fallthru
        _
    $region40: #{actor_forward.1} parent=5 // pred_fallthru
      _
    %p239 = scmp.le.s32.totalorder 1, %s15
    %p240 = scmp.lt.s32.totalorder %s15, 3
    %p241 = pnand %p239, %p240
    %p242 = pneg %p241
    // Predicated region
    $region45: #{actor_forward.1} parent=5 // pred_check
      _
    $region46: #{actor_forward.1} parent=5 // pred_check_branch
      %244 = sbr.rel (%p241) target = $region48
    $region47: #{actor_forward.1} parent=5 // pred_region
      %s245 = ssub.s32 %s15, 1
      %s246 = smul.u32 4, %s20
      %p247 = scmp.lt.s32.totalorder %s246, 7
      %s248 = scalar_select %p247, %s246, 7
      %s249 = smul.addr %s248, 4
      %s250 = scalar_lea.vmem %s0, %s249
      %p251 = pneg %p41
      %p252 = pneg %p38
      %p253 = pneg %p62
      %p254 = pneg %p59
      %p255 = pneg %p83
      %p256 = pneg %p80
      %p257 = pneg %p104
      %p258 = pneg %p101
      %p259 = pneg %p125
      %p260 = pneg %p122
      %p261 = pneg %p146
      %p262 = pneg %p143
      %p263 = pneg %p167
      %p264 = pneg %p164
      %p265 = pneg %p193
      %p266 = pneg %p190
      %s267 = smul.u32 4, %s20
      %p268 = scmp.lt.s32.totalorder %s267, 7
      %s269 = scalar_select %p268, %s267, 7
      %s270 = smul.addr %s269, 2
      %s271 = scalar_lea.vmem %s7, %s270
      %s272 = smul.u32 4, %s20
      %p273 = scmp.lt.s32.totalorder %s272, 7
      %s274 = scalar_select %p273, %s272, 7
      %s275 = smul.addr %s274, 4
      %s276 = scalar_lea.vmem %s0, %s275
      %s277 = smul.u32 4, %s20
      %s278 = smul.u32 4, %s20
      %p279 = scmp.lt.s32.totalorder %s278, 7
      %s280 = scalar_select %p279, %s278, 7
      %s281 = smul.addr %s280, 2
      %s282 = scalar_lea.vmem %s7, %s281
      %s283 = smul.u32 4, %s20
      %v284 = vld [vmem:[%s276] sm:$0xff]
      %v285 = vld [vmem:[%s276 + $0x8] sm:$0xff]
      %v286 = vld [vmem:[%s1] sm:$0xff]
      %v287 = vld [vmem:[%s1 + $0x8] sm:$0xff]
      %v288 = vld [vmem:[%s1 + $0x10] sm:$0xff]
      %v289 = vld [vmem:[%s1 + $0x18] sm:$0xff]
      %v290 = vld [vmem:[%s1 + $0x20] sm:$0xff]
      %v291 = vld [vmem:[%s1 + $0x28] sm:$0xff]
      %v292 = vld [vmem:[%s1 + $0x30] sm:$0xff]
      %v293 = vld [vmem:[%s1 + $0x38] sm:$0xff]
      %v294 = vld [vmem:[%s1 + $0x40] sm:$0xff]
      %v295 = vld [vmem:[%s1 + $0x48] sm:$0xff]
      %v296 = vld [vmem:[%s1 + $0x50] sm:$0xff]
      %v297 = vld [vmem:[%s1 + $0x58] sm:$0xff]
      %v298 = vld [vmem:[%s1 + $0x60] sm:$0xff]
      %v299 = vld [vmem:[%s1 + $0x68] sm:$0xff]
      %v300 = vld [vmem:[%s1 + $0x70] sm:$0xff]
      %v301 = vld [vmem:[%s1 + $0x78] sm:$0xff]
      %303 = vset.pattern.permute.xlu0 0
      %304 = vperm.xlu0 %303, %v286
      %v305 = vpop.permute.xlu0 %304
      %308 = vset.pattern.permute.xlu0 0
      %309 = vperm.xlu0 %308, %v287
      %v310 = vpop.permute.xlu0 %309
      %313 = vset.pattern.permute.xlu0 0
      %314 = vperm.xlu0 %313, %v288
      %v315 = vpop.permute.xlu0 %314
      %318 = vset.pattern.permute.xlu0 0
      %319 = vperm.xlu0 %318, %v289
      %v320 = vpop.permute.xlu0 %319
      %323 = vset.pattern.permute.xlu0 0
      %324 = vperm.xlu0 %323, %v290
      %v325 = vpop.permute.xlu0 %324
      %328 = vset.pattern.permute.xlu0 0
      %329 = vperm.xlu0 %328, %v291
      %v330 = vpop.permute.xlu0 %329
      %333 = vset.pattern.permute.xlu0 0
      %334 = vperm.xlu0 %333, %v292
      %v335 = vpop.permute.xlu0 %334
      %338 = vset.pattern.permute.xlu0 0
      %339 = vperm.xlu0 %338, %v293
      %v340 = vpop.permute.xlu0 %339
      %343 = vset.pattern.permute.xlu0 0
      %344 = vperm.xlu0 %343, %v294
      %v345 = vpop.permute.xlu0 %344
      %348 = vset.pattern.permute.xlu0 0
      %349 = vperm.xlu0 %348, %v295
      %v350 = vpop.permute.xlu0 %349
      %353 = vset.pattern.permute.xlu0 0
      %354 = vperm.xlu0 %353, %v296
      %v355 = vpop.permute.xlu0 %354
      %358 = vset.pattern.permute.xlu0 0
      %359 = vperm.xlu0 %358, %v297
      %v360 = vpop.permute.xlu0 %359
      %363 = vset.pattern.permute.xlu0 0
      %364 = vperm.xlu0 %363, %v298
      %v365 = vpop.permute.xlu0 %364
      %368 = vset.pattern.permute.xlu0 0
      %369 = vperm.xlu0 %368, %v299
      %v370 = vpop.permute.xlu0 %369
      %373 = vset.pattern.permute.xlu0 0
      %374 = vperm.xlu0 %373, %v300
      %v375 = vpop.permute.xlu0 %374
      %378 = vset.pattern.permute.xlu0 0
      %379 = vperm.xlu0 %378, %v301
      %v380 = vpop.permute.xlu0 %379
      %v384 = vperm.slane %v284, 0
      %v385 = vperm.slane %v284, 4
      %v386 = vperm.slane %v285, 0
      %v387 = vperm.slane %v285, 4
      %v392 = vperm.slane %v384, 0
      %v393 = vperm.slane %v385, 0
      %v394 = vperm.slane %v386, 0
      %v395 = vperm.slane %v387, 0
      %v396 = vmul.f32 %v305, %v392
      %v397 = vmul.f32 %v305, %v393
      %v398 = vmul.f32 %v305, %v394
      %v399 = vmul.f32 %v305, %v395
      %v400 = vmul.f32 %v310, %v392
      %v401 = vmul.f32 %v310, %v393
      %v402 = vmul.f32 %v310, %v394
      %v403 = vmul.f32 %v310, %v395
      %v404 = vmul.f32 %v315, %v392
      %v405 = vmul.f32 %v315, %v393
      %v406 = vmul.f32 %v315, %v394
      %v407 = vmul.f32 %v315, %v395
      %v408 = vmul.f32 %v320, %v392
      %v409 = vmul.f32 %v320, %v393
      %v410 = vmul.f32 %v320, %v394
      %v411 = vmul.f32 %v320, %v395
      %v412 = vmul.f32 %v325, %v392
      %v413 = vmul.f32 %v325, %v393
      %v414 = vmul.f32 %v325, %v394
      %v415 = vmul.f32 %v325, %v395
      %v416 = vmul.f32 %v330, %v392
      %v417 = vmul.f32 %v330, %v393
      %v418 = vmul.f32 %v330, %v394
      %v419 = vmul.f32 %v330, %v395
      %v420 = vmul.f32 %v335, %v392
      %v421 = vmul.f32 %v335, %v393
      %v422 = vmul.f32 %v335, %v394
      %v423 = vmul.f32 %v335, %v395
      %v424 = vmul.f32 %v340, %v392
      %v425 = vmul.f32 %v340, %v393
      %v426 = vmul.f32 %v340, %v394
      %v427 = vmul.f32 %v340, %v395
      %v428 = vmul.f32 %v345, %v392
      %v429 = vmul.f32 %v345, %v393
      %v430 = vmul.f32 %v345, %v394
      %v431 = vmul.f32 %v345, %v395
      %v432 = vmul.f32 %v350, %v392
      %v433 = vmul.f32 %v350, %v393
      %v434 = vmul.f32 %v350, %v394
      %v435 = vmul.f32 %v350, %v395
      %v436 = vmul.f32 %v355, %v392
      %v437 = vmul.f32 %v355, %v393
      %v438 = vmul.f32 %v355, %v394
      %v439 = vmul.f32 %v355, %v395
      %v440 = vmul.f32 %v360, %v392
      %v441 = vmul.f32 %v360, %v393
      %v442 = vmul.f32 %v360, %v394
      %v443 = vmul.f32 %v360, %v395
      %v444 = vmul.f32 %v365, %v392
      %v445 = vmul.f32 %v365, %v393
      %v446 = vmul.f32 %v365, %v394
      %v447 = vmul.f32 %v365, %v395
      %v448 = vmul.f32 %v370, %v392
      %v449 = vmul.f32 %v370, %v393
      %v450 = vmul.f32 %v370, %v394
      %v451 = vmul.f32 %v370, %v395
      %v452 = vmul.f32 %v375, %v392
      %v453 = vmul.f32 %v375, %v393
      %v454 = vmul.f32 %v375, %v394
      %v455 = vmul.f32 %v375, %v395
      %v456 = vmul.f32 %v380, %v392
      %v457 = vmul.f32 %v380, %v393
      %v458 = vmul.f32 %v380, %v394
      %v459 = vmul.f32 %v380, %v395
      %v460 = vld [vmem:[%s2] sm:$0xff]
      %v461 = vld [vmem:[%s2 + $0x8] sm:$0xff]
      %v462 = vld [vmem:[%s2 + $0x10] sm:$0xff]
      %v463 = vld [vmem:[%s2 + $0x18] sm:$0xff]
      %v464 = vld [vmem:[%s2 + $0x20] sm:$0xff]
      %v465 = vld [vmem:[%s2 + $0x28] sm:$0xff]
      %v466 = vld [vmem:[%s2 + $0x30] sm:$0xff]
      %v467 = vld [vmem:[%s2 + $0x38] sm:$0xff]
      %v468 = vld [vmem:[%s2 + $0x40] sm:$0xff]
      %v469 = vld [vmem:[%s2 + $0x48] sm:$0xff]
      %v470 = vld [vmem:[%s2 + $0x50] sm:$0xff]
      %v471 = vld [vmem:[%s2 + $0x58] sm:$0xff]
      %v472 = vld [vmem:[%s2 + $0x60] sm:$0xff]
      %v473 = vld [vmem:[%s2 + $0x68] sm:$0xff]
      %v474 = vld [vmem:[%s2 + $0x70] sm:$0xff]
      %v475 = vld [vmem:[%s2 + $0x78] sm:$0xff]
      %477 = vset.pattern.permute.xlu0 0
      %478 = vperm.xlu0 %477, %v460
      %v479 = vpop.permute.xlu0 %478
      %482 = vset.pattern.permute.xlu0 0
      %483 = vperm.xlu0 %482, %v461
      %v484 = vpop.permute.xlu0 %483
      %487 = vset.pattern.permute.xlu0 0
      %488 = vperm.xlu0 %487, %v462
      %v489 = vpop.permute.xlu0 %488
      %492 = vset.pattern.permute.xlu0 0
      %493 = vperm.xlu0 %492, %v463
      %v494 = vpop.permute.xlu0 %493
      %497 = vset.pattern.permute.xlu0 0
      %498 = vperm.xlu0 %497, %v464
      %v499 = vpop.permute.xlu0 %498
      %502 = vset.pattern.permute.xlu0 0
      %503 = vperm.xlu0 %502, %v465
      %v504 = vpop.permute.xlu0 %503
      %507 = vset.pattern.permute.xlu0 0
      %508 = vperm.xlu0 %507, %v466
      %v509 = vpop.permute.xlu0 %508
      %512 = vset.pattern.permute.xlu0 0
      %513 = vperm.xlu0 %512, %v467
      %v514 = vpop.permute.xlu0 %513
      %517 = vset.pattern.permute.xlu0 0
      %518 = vperm.xlu0 %517, %v468
      %v519 = vpop.permute.xlu0 %518
      %522 = vset.pattern.permute.xlu0 0
      %523 = vperm.xlu0 %522, %v469
      %v524 = vpop.permute.xlu0 %523
      %527 = vset.pattern.permute.xlu0 0
      %528 = vperm.xlu0 %527, %v470
      %v529 = vpop.permute.xlu0 %528
      %532 = vset.pattern.permute.xlu0 0
      %533 = vperm.xlu0 %532, %v471
      %v534 = vpop.permute.xlu0 %533
      %537 = vset.pattern.permute.xlu0 0
      %538 = vperm.xlu0 %537, %v472
      %v539 = vpop.permute.xlu0 %538
      %542 = vset.pattern.permute.xlu0 0
      %543 = vperm.xlu0 %542, %v473
      %v544 = vpop.permute.xlu0 %543
      %547 = vset.pattern.permute.xlu0 0
      %548 = vperm.xlu0 %547, %v474
      %v549 = vpop.permute.xlu0 %548
      %552 = vset.pattern.permute.xlu0 0
      %553 = vperm.xlu0 %552, %v475
      %v554 = vpop.permute.xlu0 %553
      %v556 = vadd.f32 %v396, %v479
      %v557 = vadd.f32 %v397, %v479
      %v558 = vadd.f32 %v398, %v479
      %v559 = vadd.f32 %v399, %v479
      %v560 = vadd.f32 %v400, %v484
      %v561 = vadd.f32 %v401, %v484
      %v562 = vadd.f32 %v402, %v484
      %v563 = vadd.f32 %v403, %v484
      %v564 = vadd.f32 %v404, %v489
      %v565 = vadd.f32 %v405, %v489
      %v566 = vadd.f32 %v406, %v489
      %v567 = vadd.f32 %v407, %v489
      %v568 = vadd.f32 %v408, %v494
      %v569 = vadd.f32 %v409, %v494
      %v570 = vadd.f32 %v410, %v494
      %v571 = vadd.f32 %v411, %v494
      %v572 = vadd.f32 %v412, %v499
      %v573 = vadd.f32 %v413, %v499
      %v574 = vadd.f32 %v414, %v499
      %v575 = vadd.f32 %v415, %v499
      %v576 = vadd.f32 %v416, %v504
      %v577 = vadd.f32 %v417, %v504
      %v578 = vadd.f32 %v418, %v504
      %v579 = vadd.f32 %v419, %v504
      %v580 = vadd.f32 %v420, %v509
      %v581 = vadd.f32 %v421, %v509
      %v582 = vadd.f32 %v422, %v509
      %v583 = vadd.f32 %v423, %v509
      %v584 = vadd.f32 %v424, %v514
      %v585 = vadd.f32 %v425, %v514
      %v586 = vadd.f32 %v426, %v514
      %v587 = vadd.f32 %v427, %v514
      %v588 = vadd.f32 %v428, %v519
      %v589 = vadd.f32 %v429, %v519
      %v590 = vadd.f32 %v430, %v519
      %v591 = vadd.f32 %v431, %v519
      %v592 = vadd.f32 %v432, %v524
      %v593 = vadd.f32 %v433, %v524
      %v594 = vadd.f32 %v434, %v524
      %v595 = vadd.f32 %v435, %v524
      %v596 = vadd.f32 %v436, %v529
      %v597 = vadd.f32 %v437, %v529
      %v598 = vadd.f32 %v438, %v529
      %v599 = vadd.f32 %v439, %v529
      %v600 = vadd.f32 %v440, %v534
      %v601 = vadd.f32 %v441, %v534
      %v602 = vadd.f32 %v442, %v534
      %v603 = vadd.f32 %v443, %v534
      %v604 = vadd.f32 %v444, %v539
      %v605 = vadd.f32 %v445, %v539
      %v606 = vadd.f32 %v446, %v539
      %v607 = vadd.f32 %v447, %v539
      %v608 = vadd.f32 %v448, %v544
      %v609 = vadd.f32 %v449, %v544
      %v610 = vadd.f32 %v450, %v544
      %v611 = vadd.f32 %v451, %v544
      %v612 = vadd.f32 %v452, %v549
      %v613 = vadd.f32 %v453, %v549
      %v614 = vadd.f32 %v454, %v549
      %v615 = vadd.f32 %v455, %v549
      %v616 = vadd.f32 %v456, %v554
      %v617 = vadd.f32 %v457, %v554
      %v618 = vadd.f32 %v458, %v554
      %v619 = vadd.f32 %v459, %v554
      %620 = vset.pattern.permute.xlu0 1
      %621 = vperm.xlu0 %620, %v286
      %v622 = vpop.permute.xlu0 %621
      %624 = vset.pattern.permute.xlu0 1
      %625 = vperm.xlu0 %624, %v287
      %v626 = vpop.permute.xlu0 %625
      %628 = vset.pattern.permute.xlu0 1
      %629 = vperm.xlu0 %628, %v288
      %v630 = vpop.permute.xlu0 %629
      %632 = vset.pattern.permute.xlu0 1
      %633 = vperm.xlu0 %632, %v289
      %v634 = vpop.permute.xlu0 %633
      %636 = vset.pattern.permute.xlu0 1
      %637 = vperm.xlu0 %636, %v290
      %v638 = vpop.permute.xlu0 %637
      %640 = vset.pattern.permute.xlu0 1
      %641 = vperm.xlu0 %640, %v291
      %v642 = vpop.permute.xlu0 %641
      %644 = vset.pattern.permute.xlu0 1
      %645 = vperm.xlu0 %644, %v292
      %v646 = vpop.permute.xlu0 %645
      %648 = vset.pattern.permute.xlu0 1
      %649 = vperm.xlu0 %648, %v293
      %v650 = vpop.permute.xlu0 %649
      %652 = vset.pattern.permute.xlu0 1
      %653 = vperm.xlu0 %652, %v294
      %v654 = vpop.permute.xlu0 %653
      %656 = vset.pattern.permute.xlu0 1
      %657 = vperm.xlu0 %656, %v295
      %v658 = vpop.permute.xlu0 %657
      %660 = vset.pattern.permute.xlu0 1
      %661 = vperm.xlu0 %660, %v296
      %v662 = vpop.permute.xlu0 %661
      %664 = vset.pattern.permute.xlu0 1
      %665 = vperm.xlu0 %664, %v297
      %v666 = vpop.permute.xlu0 %665
      %668 = vset.pattern.permute.xlu0 1
      %669 = vperm.xlu0 %668, %v298
      %v670 = vpop.permute.xlu0 %669
      %672 = vset.pattern.permute.xlu0 1
      %673 = vperm.xlu0 %672, %v299
      %v674 = vpop.permute.xlu0 %673
      %676 = vset.pattern.permute.xlu0 1
      %677 = vperm.xlu0 %676, %v300
      %v678 = vpop.permute.xlu0 %677
      %680 = vset.pattern.permute.xlu0 1
      %681 = vperm.xlu0 %680, %v301
      %v682 = vpop.permute.xlu0 %681
      %v684 = vperm.slane %v284, 1
      %v685 = vperm.slane %v284, 5
      %v686 = vperm.slane %v285, 1
      %v687 = vperm.slane %v285, 5
      %v692 = vperm.slane %v684, 1
      %v693 = vperm.slane %v685, 1
      %v694 = vperm.slane %v686, 1
      %v695 = vperm.slane %v687, 1
      %v696 = vmul.f32 %v622, %v692
      %v697 = vmul.f32 %v622, %v693
      %v698 = vmul.f32 %v622, %v694
      %v699 = vmul.f32 %v622, %v695
      %v700 = vmul.f32 %v626, %v692
      %v701 = vmul.f32 %v626, %v693
      %v702 = vmul.f32 %v626, %v694
      %v703 = vmul.f32 %v626, %v695
      %v704 = vmul.f32 %v630, %v692
      %v705 = vmul.f32 %v630, %v693
      %v706 = vmul.f32 %v630, %v694
      %v707 = vmul.f32 %v630, %v695
      %v708 = vmul.f32 %v634, %v692
      %v709 = vmul.f32 %v634, %v693
      %v710 = vmul.f32 %v634, %v694
      %v711 = vmul.f32 %v634, %v695
      %v712 = vmul.f32 %v638, %v692
      %v713 = vmul.f32 %v638, %v693
      %v714 = vmul.f32 %v638, %v694
      %v715 = vmul.f32 %v638, %v695
      %v716 = vmul.f32 %v642, %v692
      %v717 = vmul.f32 %v642, %v693
      %v718 = vmul.f32 %v642, %v694
      %v719 = vmul.f32 %v642, %v695
      %v720 = vmul.f32 %v646, %v692
      %v721 = vmul.f32 %v646, %v693
      %v722 = vmul.f32 %v646, %v694
      %v723 = vmul.f32 %v646, %v695
      %v724 = vmul.f32 %v650, %v692
      %v725 = vmul.f32 %v650, %v693
      %v726 = vmul.f32 %v650, %v694
      %v727 = vmul.f32 %v650, %v695
      %v728 = vmul.f32 %v654, %v692
      %v729 = vmul.f32 %v654, %v693
      %v730 = vmul.f32 %v654, %v694
      %v731 = vmul.f32 %v654, %v695
      %v732 = vmul.f32 %v658, %v692
      %v733 = vmul.f32 %v658, %v693
      %v734 = vmul.f32 %v658, %v694
      %v735 = vmul.f32 %v658, %v695
      %v736 = vmul.f32 %v662, %v692
      %v737 = vmul.f32 %v662, %v693
      %v738 = vmul.f32 %v662, %v694
      %v739 = vmul.f32 %v662, %v695
      %v740 = vmul.f32 %v666, %v692
      %v741 = vmul.f32 %v666, %v693
      %v742 = vmul.f32 %v666, %v694
      %v743 = vmul.f32 %v666, %v695
      %v744 = vmul.f32 %v670, %v692
      %v745 = vmul.f32 %v670, %v693
      %v746 = vmul.f32 %v670, %v694
      %v747 = vmul.f32 %v670, %v695
      %v748 = vmul.f32 %v674, %v692
      %v749 = vmul.f32 %v674, %v693
      %v750 = vmul.f32 %v674, %v694
      %v751 = vmul.f32 %v674, %v695
      %v752 = vmul.f32 %v678, %v692
      %v753 = vmul.f32 %v678, %v693
      %v754 = vmul.f32 %v678, %v694
      %v755 = vmul.f32 %v678, %v695
      %v756 = vmul.f32 %v682, %v692
      %v757 = vmul.f32 %v682, %v693
      %v758 = vmul.f32 %v682, %v694
      %v759 = vmul.f32 %v682, %v695
      %v760 = vadd.f32 %v556, %v696
      %v761 = vadd.f32 %v557, %v697
      %v762 = vadd.f32 %v558, %v698
      %v763 = vadd.f32 %v559, %v699
      %v764 = vadd.f32 %v560, %v700
      %v765 = vadd.f32 %v561, %v701
      %v766 = vadd.f32 %v562, %v702
      %v767 = vadd.f32 %v563, %v703
      %v768 = vadd.f32 %v564, %v704
      %v769 = vadd.f32 %v565, %v705
      %v770 = vadd.f32 %v566, %v706
      %v771 = vadd.f32 %v567, %v707
      %v772 = vadd.f32 %v568, %v708
      %v773 = vadd.f32 %v569, %v709
      %v774 = vadd.f32 %v570, %v710
      %v775 = vadd.f32 %v571, %v711
      %v776 = vadd.f32 %v572, %v712
      %v777 = vadd.f32 %v573, %v713
      %v778 = vadd.f32 %v574, %v714
      %v779 = vadd.f32 %v575, %v715
      %v780 = vadd.f32 %v576, %v716
      %v781 = vadd.f32 %v577, %v717
      %v782 = vadd.f32 %v578, %v718
      %v783 = vadd.f32 %v579, %v719
      %v784 = vadd.f32 %v580, %v720
      %v785 = vadd.f32 %v581, %v721
      %v786 = vadd.f32 %v582, %v722
      %v787 = vadd.f32 %v583, %v723
      %v788 = vadd.f32 %v584, %v724
      %v789 = vadd.f32 %v585, %v725
      %v790 = vadd.f32 %v586, %v726
      %v791 = vadd.f32 %v587, %v727
      %v792 = vadd.f32 %v588, %v728
      %v793 = vadd.f32 %v589, %v729
      %v794 = vadd.f32 %v590, %v730
      %v795 = vadd.f32 %v591, %v731
      %v796 = vadd.f32 %v592, %v732
      %v797 = vadd.f32 %v593, %v733
      %v798 = vadd.f32 %v594, %v734
      %v799 = vadd.f32 %v595, %v735
      %v800 = vadd.f32 %v596, %v736
      %v801 = vadd.f32 %v597, %v737
      %v802 = vadd.f32 %v598, %v738
      %v803 = vadd.f32 %v599, %v739
      %v804 = vadd.f32 %v600, %v740
      %v805 = vadd.f32 %v601, %v741
      %v806 = vadd.f32 %v602, %v742
      %v807 = vadd.f32 %v603, %v743
      %v808 = vadd.f32 %v604, %v744
      %v809 = vadd.f32 %v605, %v745
      %v810 = vadd.f32 %v606, %v746
      %v811 = vadd.f32 %v607, %v747
      %v812 = vadd.f32 %v608, %v748
      %v813 = vadd.f32 %v609, %v749
      %v814 = vadd.f32 %v610, %v750
      %v815 = vadd.f32 %v611, %v751
      %v816 = vadd.f32 %v612, %v752
      %v817 = vadd.f32 %v613, %v753
      %v818 = vadd.f32 %v614, %v754
      %v819 = vadd.f32 %v615, %v755
      %v820 = vadd.f32 %v616, %v756
      %v821 = vadd.f32 %v617, %v757
      %v822 = vadd.f32 %v618, %v758
      %v823 = vadd.f32 %v619, %v759
      %824 = vset.pattern.permute.xlu0 2
      %825 = vperm.xlu0 %824, %v286
      %v826 = vpop.permute.xlu0 %825
      %828 = vset.pattern.permute.xlu0 2
      %829 = vperm.xlu0 %828, %v287
      %v830 = vpop.permute.xlu0 %829
      %832 = vset.pattern.permute.xlu0 2
      %833 = vperm.xlu0 %832, %v288
      %v834 = vpop.permute.xlu0 %833
      %836 = vset.pattern.permute.xlu0 2
      %837 = vperm.xlu0 %836, %v289
      %v838 = vpop.permute.xlu0 %837
      %840 = vset.pattern.permute.xlu0 2
      %841 = vperm.xlu0 %840, %v290
      %v842 = vpop.permute.xlu0 %841
      %844 = vset.pattern.permute.xlu0 2
      %845 = vperm.xlu0 %844, %v291
      %v846 = vpop.permute.xlu0 %845
      %848 = vset.pattern.permute.xlu0 2
      %849 = vperm.xlu0 %848, %v292
      %v850 = vpop.permute.xlu0 %849
      %852 = vset.pattern.permute.xlu0 2
      %853 = vperm.xlu0 %852, %v293
      %v854 = vpop.permute.xlu0 %853
      %856 = vset.pattern.permute.xlu0 2
      %857 = vperm.xlu0 %856, %v294
      %v858 = vpop.permute.xlu0 %857
      %860 = vset.pattern.permute.xlu0 2
      %861 = vperm.xlu0 %860, %v295
      %v862 = vpop.permute.xlu0 %861
      %864 = vset.pattern.permute.xlu0 2
      %865 = vperm.xlu0 %864, %v296
      %v866 = vpop.permute.xlu0 %865
      %868 = vset.pattern.permute.xlu0 2
      %869 = vperm.xlu0 %868, %v297
      %v870 = vpop.permute.xlu0 %869
      %872 = vset.pattern.permute.xlu0 2
      %873 = vperm.xlu0 %872, %v298
      %v874 = vpop.permute.xlu0 %873
      %876 = vset.pattern.permute.xlu0 2
      %877 = vperm.xlu0 %876, %v299
      %v878 = vpop.permute.xlu0 %877
      %880 = vset.pattern.permute.xlu0 2
      %881 = vperm.xlu0 %880, %v300
      %v882 = vpop.permute.xlu0 %881
      %884 = vset.pattern.permute.xlu0 2
      %885 = vperm.xlu0 %884, %v301
      %v886 = vpop.permute.xlu0 %885
      %v888 = vperm.slane %v284, 2
      %v889 = vperm.slane %v284, 6
      %v890 = vperm.slane %v285, 2
      %v891 = vperm.slane %v285, 6
      %v896 = vperm.slane %v888, 2
      %v897 = vperm.slane %v889, 2
      %v898 = vperm.slane %v890, 2
      %v899 = vperm.slane %v891, 2
      %v900 = vmul.f32 %v826, %v896
      %v901 = vmul.f32 %v826, %v897
      %v902 = vmul.f32 %v826, %v898
      %v903 = vmul.f32 %v826, %v899
      %v904 = vmul.f32 %v830, %v896
      %v905 = vmul.f32 %v830, %v897
      %v906 = vmul.f32 %v830, %v898
      %v907 = vmul.f32 %v830, %v899
      %v908 = vmul.f32 %v834, %v896
      %v909 = vmul.f32 %v834, %v897
      %v910 = vmul.f32 %v834, %v898
      %v911 = vmul.f32 %v834, %v899
      %v912 = vmul.f32 %v838, %v896
      %v913 = vmul.f32 %v838, %v897
      %v914 = vmul.f32 %v838, %v898
      %v915 = vmul.f32 %v838, %v899
      %v916 = vmul.f32 %v842, %v896
      %v917 = vmul.f32 %v842, %v897
      %v918 = vmul.f32 %v842, %v898
      %v919 = vmul.f32 %v842, %v899
      %v920 = vmul.f32 %v846, %v896
      %v921 = vmul.f32 %v846, %v897
      %v922 = vmul.f32 %v846, %v898
      %v923 = vmul.f32 %v846, %v899
      %v924 = vmul.f32 %v850, %v896
      %v925 = vmul.f32 %v850, %v897
      %v926 = vmul.f32 %v850, %v898
      %v927 = vmul.f32 %v850, %v899
      %v928 = vmul.f32 %v854, %v896
      %v929 = vmul.f32 %v854, %v897
      %v930 = vmul.f32 %v854, %v898
      %v931 = vmul.f32 %v854, %v899
      %v932 = vmul.f32 %v858, %v896
      %v933 = vmul.f32 %v858, %v897
      %v934 = vmul.f32 %v858, %v898
      %v935 = vmul.f32 %v858, %v899
      %v936 = vmul.f32 %v862, %v896
      %v937 = vmul.f32 %v862, %v897
      %v938 = vmul.f32 %v862, %v898
      %v939 = vmul.f32 %v862, %v899
      %v940 = vmul.f32 %v866, %v896
      %v941 = vmul.f32 %v866, %v897
      %v942 = vmul.f32 %v866, %v898
      %v943 = vmul.f32 %v866, %v899
      %v944 = vmul.f32 %v870, %v896
      %v945 = vmul.f32 %v870, %v897
      %v946 = vmul.f32 %v870, %v898
      %v947 = vmul.f32 %v870, %v899
      %v948 = vmul.f32 %v874, %v896
      %v949 = vmul.f32 %v874, %v897
      %v950 = vmul.f32 %v874, %v898
      %v951 = vmul.f32 %v874, %v899
      %v952 = vmul.f32 %v878, %v896
      %v953 = vmul.f32 %v878, %v897
      %v954 = vmul.f32 %v878, %v898
      %v955 = vmul.f32 %v878, %v899
      %v956 = vmul.f32 %v882, %v896
      %v957 = vmul.f32 %v882, %v897
      %v958 = vmul.f32 %v882, %v898
      %v959 = vmul.f32 %v882, %v899
      %v960 = vmul.f32 %v886, %v896
      %v961 = vmul.f32 %v886, %v897
      %v962 = vmul.f32 %v886, %v898
      %v963 = vmul.f32 %v886, %v899
      %v964 = vadd.f32 %v760, %v900
      %v965 = vadd.f32 %v761, %v901
      %v966 = vadd.f32 %v762, %v902
      %v967 = vadd.f32 %v763, %v903
      %v968 = vadd.f32 %v764, %v904
      %v969 = vadd.f32 %v765, %v905
      %v970 = vadd.f32 %v766, %v906
      %v971 = vadd.f32 %v767, %v907
      %v972 = vadd.f32 %v768, %v908
      %v973 = vadd.f32 %v769, %v909
      %v974 = vadd.f32 %v770, %v910
      %v975 = vadd.f32 %v771, %v911
      %v976 = vadd.f32 %v772, %v912
      %v977 = vadd.f32 %v773, %v913
      %v978 = vadd.f32 %v774, %v914
      %v979 = vadd.f32 %v775, %v915
      %v980 = vadd.f32 %v776, %v916
      %v981 = vadd.f32 %v777, %v917
      %v982 = vadd.f32 %v778, %v918
      %v983 = vadd.f32 %v779, %v919
      %v984 = vadd.f32 %v780, %v920
      %v985 = vadd.f32 %v781, %v921
      %v986 = vadd.f32 %v782, %v922
      %v987 = vadd.f32 %v783, %v923
      %v988 = vadd.f32 %v784, %v924
      %v989 = vadd.f32 %v785, %v925
      %v990 = vadd.f32 %v786, %v926
      %v991 = vadd.f32 %v787, %v927
      %v992 = vadd.f32 %v788, %v928
      %v993 = vadd.f32 %v789, %v929
      %v994 = vadd.f32 %v790, %v930
      %v995 = vadd.f32 %v791, %v931
      %v996 = vadd.f32 %v792, %v932
      %v997 = vadd.f32 %v793, %v933
      %v998 = vadd.f32 %v794, %v934
      %v999 = vadd.f32 %v795, %v935
      %v1000 = vadd.f32 %v796, %v936
      %v1001 = vadd.f32 %v797, %v937
      %v1002 = vadd.f32 %v798, %v938
      %v1003 = vadd.f32 %v799, %v939
      %v1004 = vadd.f32 %v800, %v940
      %v1005 = vadd.f32 %v801, %v941
      %v1006 = vadd.f32 %v802, %v942
      %v1007 = vadd.f32 %v803, %v943
      %v1008 = vadd.f32 %v804, %v944
      %v1009 = vadd.f32 %v805, %v945
      %v1010 = vadd.f32 %v806, %v946
      %v1011 = vadd.f32 %v807, %v947
      %v1012 = vadd.f32 %v808, %v948
      %v1013 = vadd.f32 %v809, %v949
      %v1014 = vadd.f32 %v810, %v950
      %v1015 = vadd.f32 %v811, %v951
      %v1016 = vadd.f32 %v812, %v952
      %v1017 = vadd.f32 %v813, %v953
      %v1018 = vadd.f32 %v814, %v954
      %v1019 = vadd.f32 %v815, %v955
      %v1020 = vadd.f32 %v816, %v956
      %v1021 = vadd.f32 %v817, %v957
      %v1022 = vadd.f32 %v818, %v958
      %v1023 = vadd.f32 %v819, %v959
      %v1024 = vadd.f32 %v820, %v960
      %v1025 = vadd.f32 %v821, %v961
      %v1026 = vadd.f32 %v822, %v962
      %v1027 = vadd.f32 %v823, %v963
      %1028 = vset.pattern.permute.xlu0 3
      %1029 = vperm.xlu0 %1028, %v286
      %v1030 = vpop.permute.xlu0 %1029
      %1032 = vset.pattern.permute.xlu0 3
      %1033 = vperm.xlu0 %1032, %v287
      %v1034 = vpop.permute.xlu0 %1033
      %1036 = vset.pattern.permute.xlu0 3
      %1037 = vperm.xlu0 %1036, %v288
      %v1038 = vpop.permute.xlu0 %1037
      %1040 = vset.pattern.permute.xlu0 3
      %1041 = vperm.xlu0 %1040, %v289
      %v1042 = vpop.permute.xlu0 %1041
      %1044 = vset.pattern.permute.xlu0 3
      %1045 = vperm.xlu0 %1044, %v290
      %v1046 = vpop.permute.xlu0 %1045
      %1048 = vset.pattern.permute.xlu0 3
      %1049 = vperm.xlu0 %1048, %v291
      %v1050 = vpop.permute.xlu0 %1049
      %1052 = vset.pattern.permute.xlu0 3
      %1053 = vperm.xlu0 %1052, %v292
      %v1054 = vpop.permute.xlu0 %1053
      %1056 = vset.pattern.permute.xlu0 3
      %1057 = vperm.xlu0 %1056, %v293
      %v1058 = vpop.permute.xlu0 %1057
      %1060 = vset.pattern.permute.xlu0 3
      %1061 = vperm.xlu0 %1060, %v294
      %v1062 = vpop.permute.xlu0 %1061
      %1064 = vset.pattern.permute.xlu0 3
      %1065 = vperm.xlu0 %1064, %v295
      %v1066 = vpop.permute.xlu0 %1065
      %1068 = vset.pattern.permute.xlu0 3
      %1069 = vperm.xlu0 %1068, %v296
      %v1070 = vpop.permute.xlu0 %1069
      %1072 = vset.pattern.permute.xlu0 3
      %1073 = vperm.xlu0 %1072, %v297
      %v1074 = vpop.permute.xlu0 %1073
      %1076 = vset.pattern.permute.xlu0 3
      %1077 = vperm.xlu0 %1076, %v298
      %v1078 = vpop.permute.xlu0 %1077
      %1080 = vset.pattern.permute.xlu0 3
      %1081 = vperm.xlu0 %1080, %v299
      %v1082 = vpop.permute.xlu0 %1081
      %1084 = vset.pattern.permute.xlu0 3
      %1085 = vperm.xlu0 %1084, %v300
      %v1086 = vpop.permute.xlu0 %1085
      %1088 = vset.pattern.permute.xlu0 3
      %1089 = vperm.xlu0 %1088, %v301
      %v1090 = vpop.permute.xlu0 %1089
      %v1092 = vperm.slane %v284, 3
      %v1093 = vperm.slane %v284, 7
      %v1094 = vperm.slane %v285, 3
      %v1095 = vperm.slane %v285, 7
      %v1100 = vperm.slane %v1092, 3
      %v1101 = vperm.slane %v1093, 3
      %v1102 = vperm.slane %v1094, 3
      %v1103 = vperm.slane %v1095, 3
      %v1104 = vmul.f32 %v1030, %v1100
      %v1105 = vmul.f32 %v1030, %v1101
      %v1106 = vmul.f32 %v1030, %v1102
      %v1107 = vmul.f32 %v1030, %v1103
      %v1108 = vmul.f32 %v1034, %v1100
      %v1109 = vmul.f32 %v1034, %v1101
      %v1110 = vmul.f32 %v1034, %v1102
      %v1111 = vmul.f32 %v1034, %v1103
      %v1112 = vmul.f32 %v1038, %v1100
      %v1113 = vmul.f32 %v1038, %v1101
      %v1114 = vmul.f32 %v1038, %v1102
      %v1115 = vmul.f32 %v1038, %v1103
      %v1116 = vmul.f32 %v1042, %v1100
      %v1117 = vmul.f32 %v1042, %v1101
      %v1118 = vmul.f32 %v1042, %v1102
      %v1119 = vmul.f32 %v1042, %v1103
      %v1120 = vmul.f32 %v1046, %v1100
      %v1121 = vmul.f32 %v1046, %v1101
      %v1122 = vmul.f32 %v1046, %v1102
      %v1123 = vmul.f32 %v1046, %v1103
      %v1124 = vmul.f32 %v1050, %v1100
      %v1125 = vmul.f32 %v1050, %v1101
      %v1126 = vmul.f32 %v1050, %v1102
      %v1127 = vmul.f32 %v1050, %v1103
      %v1128 = vmul.f32 %v1054, %v1100
      %v1129 = vmul.f32 %v1054, %v1101
      %v1130 = vmul.f32 %v1054, %v1102
      %v1131 = vmul.f32 %v1054, %v1103
      %v1132 = vmul.f32 %v1058, %v1100
      %v1133 = vmul.f32 %v1058, %v1101
      %v1134 = vmul.f32 %v1058, %v1102
      %v1135 = vmul.f32 %v1058, %v1103
      %v1136 = vmul.f32 %v1062, %v1100
      %v1137 = vmul.f32 %v1062, %v1101
      %v1138 = vmul.f32 %v1062, %v1102
      %v1139 = vmul.f32 %v1062, %v1103
      %v1140 = vmul.f32 %v1066, %v1100
      %v1141 = vmul.f32 %v1066, %v1101
      %v1142 = vmul.f32 %v1066, %v1102
      %v1143 = vmul.f32 %v1066, %v1103
      %v1144 = vmul.f32 %v1070, %v1100
      %v1145 = vmul.f32 %v1070, %v1101
      %v1146 = vmul.f32 %v1070, %v1102
      %v1147 = vmul.f32 %v1070, %v1103
      %v1148 = vmul.f32 %v1074, %v1100
      %v1149 = vmul.f32 %v1074, %v1101
      %v1150 = vmul.f32 %v1074, %v1102
      %v1151 = vmul.f32 %v1074, %v1103
      %v1152 = vmul.f32 %v1078, %v1100
      %v1153 = vmul.f32 %v1078, %v1101
      %v1154 = vmul.f32 %v1078, %v1102
      %v1155 = vmul.f32 %v1078, %v1103
      %v1156 = vmul.f32 %v1082, %v1100
      %v1157 = vmul.f32 %v1082, %v1101
      %v1158 = vmul.f32 %v1082, %v1102
      %v1159 = vmul.f32 %v1082, %v1103
      %v1160 = vmul.f32 %v1086, %v1100
      %v1161 = vmul.f32 %v1086, %v1101
      %v1162 = vmul.f32 %v1086, %v1102
      %v1163 = vmul.f32 %v1086, %v1103
      %v1164 = vmul.f32 %v1090, %v1100
      %v1165 = vmul.f32 %v1090, %v1101
      %v1166 = vmul.f32 %v1090, %v1102
      %v1167 = vmul.f32 %v1090, %v1103
      %v1168 = vadd.f32 %v964, %v1104
      %v1169 = vadd.f32 %v965, %v1105
      %v1170 = vadd.f32 %v966, %v1106
      %v1171 = vadd.f32 %v967, %v1107
      %v1172 = vadd.f32 %v968, %v1108
      %v1173 = vadd.f32 %v969, %v1109
      %v1174 = vadd.f32 %v970, %v1110
      %v1175 = vadd.f32 %v971, %v1111
      %v1176 = vadd.f32 %v972, %v1112
      %v1177 = vadd.f32 %v973, %v1113
      %v1178 = vadd.f32 %v974, %v1114
      %v1179 = vadd.f32 %v975, %v1115
      %v1180 = vadd.f32 %v976, %v1116
      %v1181 = vadd.f32 %v977, %v1117
      %v1182 = vadd.f32 %v978, %v1118
      %v1183 = vadd.f32 %v979, %v1119
      %v1184 = vadd.f32 %v980, %v1120
      %v1185 = vadd.f32 %v981, %v1121
      %v1186 = vadd.f32 %v982, %v1122
      %v1187 = vadd.f32 %v983, %v1123
      %v1188 = vadd.f32 %v984, %v1124
      %v1189 = vadd.f32 %v985, %v1125
      %v1190 = vadd.f32 %v986, %v1126
      %v1191 = vadd.f32 %v987, %v1127
      %v1192 = vadd.f32 %v988, %v1128
      %v1193 = vadd.f32 %v989, %v1129
      %v1194 = vadd.f32 %v990, %v1130
      %v1195 = vadd.f32 %v991, %v1131
      %v1196 = vadd.f32 %v992, %v1132
      %v1197 = vadd.f32 %v993, %v1133
      %v1198 = vadd.f32 %v994, %v1134
      %v1199 = vadd.f32 %v995, %v1135
      %v1200 = vadd.f32 %v996, %v1136
      %v1201 = vadd.f32 %v997, %v1137
      %v1202 = vadd.f32 %v998, %v1138
      %v1203 = vadd.f32 %v999, %v1139
      %v1204 = vadd.f32 %v1000, %v1140
      %v1205 = vadd.f32 %v1001, %v1141
      %v1206 = vadd.f32 %v1002, %v1142
      %v1207 = vadd.f32 %v1003, %v1143
      %v1208 = vadd.f32 %v1004, %v1144
      %v1209 = vadd.f32 %v1005, %v1145
      %v1210 = vadd.f32 %v1006, %v1146
      %v1211 = vadd.f32 %v1007, %v1147
      %v1212 = vadd.f32 %v1008, %v1148
      %v1213 = vadd.f32 %v1009, %v1149
      %v1214 = vadd.f32 %v1010, %v1150
      %v1215 = vadd.f32 %v1011, %v1151
      %v1216 = vadd.f32 %v1012, %v1152
      %v1217 = vadd.f32 %v1013, %v1153
      %v1218 = vadd.f32 %v1014, %v1154
      %v1219 = vadd.f32 %v1015, %v1155
      %v1220 = vadd.f32 %v1016, %v1156
      %v1221 = vadd.f32 %v1017, %v1157
      %v1222 = vadd.f32 %v1018, %v1158
      %v1223 = vadd.f32 %v1019, %v1159
      %v1224 = vadd.f32 %v1020, %v1160
      %v1225 = vadd.f32 %v1021, %v1161
      %v1226 = vadd.f32 %v1022, %v1162
      %v1227 = vadd.f32 %v1023, %v1163
      %v1228 = vadd.f32 %v1024, %v1164
      %v1229 = vadd.f32 %v1025, %v1165
      %v1230 = vadd.f32 %v1026, %v1166
      %v1231 = vadd.f32 %v1027, %v1167
      %v1232 = vmul.f32 %v1168, 0.01
      %v1233 = vmul.f32 %v1169, 0.01
      %v1234 = vmul.f32 %v1170, 0.01
      %v1235 = vmul.f32 %v1171, 0.01
      %v1236 = vmul.f32 %v1172, 0.01
      %v1237 = vmul.f32 %v1173, 0.01
      %v1238 = vmul.f32 %v1174, 0.01
      %v1239 = vmul.f32 %v1175, 0.01
      %v1240 = vmul.f32 %v1176, 0.01
      %v1241 = vmul.f32 %v1177, 0.01
      %v1242 = vmul.f32 %v1178, 0.01
      %v1243 = vmul.f32 %v1179, 0.01
      %v1244 = vmul.f32 %v1180, 0.01
      %v1245 = vmul.f32 %v1181, 0.01
      %v1246 = vmul.f32 %v1182, 0.01
      %v1247 = vmul.f32 %v1183, 0.01
      %v1248 = vmul.f32 %v1184, 0.01
      %v1249 = vmul.f32 %v1185, 0.01
      %v1250 = vmul.f32 %v1186, 0.01
      %v1251 = vmul.f32 %v1187, 0.01
      %v1252 = vmul.f32 %v1188, 0.01
      %v1253 = vmul.f32 %v1189, 0.01
      %v1254 = vmul.f32 %v1190, 0.01
      %v1255 = vmul.f32 %v1191, 0.01
      %v1256 = vmul.f32 %v1192, 0.01
      %v1257 = vmul.f32 %v1193, 0.01
      %v1258 = vmul.f32 %v1194, 0.01
      %v1259 = vmul.f32 %v1195, 0.01
      %v1260 = vmul.f32 %v1196, 0.01
      %v1261 = vmul.f32 %v1197, 0.01
      %v1262 = vmul.f32 %v1198, 0.01
      %v1263 = vmul.f32 %v1199, 0.01
      %v1264 = vmul.f32 %v1200, 0.01
      %v1265 = vmul.f32 %v1201, 0.01
      %v1266 = vmul.f32 %v1202, 0.01
      %v1267 = vmul.f32 %v1203, 0.01
      %v1268 = vmul.f32 %v1204, 0.01
      %v1269 = vmul.f32 %v1205, 0.01
      %v1270 = vmul.f32 %v1206, 0.01
      %v1271 = vmul.f32 %v1207, 0.01
      %v1272 = vmul.f32 %v1208, 0.01
      %v1273 = vmul.f32 %v1209, 0.01
      %v1274 = vmul.f32 %v1210, 0.01
      %v1275 = vmul.f32 %v1211, 0.01
      %v1276 = vmul.f32 %v1212, 0.01
      %v1277 = vmul.f32 %v1213, 0.01
      %v1278 = vmul.f32 %v1214, 0.01
      %v1279 = vmul.f32 %v1215, 0.01
      %v1280 = vmul.f32 %v1216, 0.01
      %v1281 = vmul.f32 %v1217, 0.01
      %v1282 = vmul.f32 %v1218, 0.01
      %v1283 = vmul.f32 %v1219, 0.01
      %v1284 = vmul.f32 %v1220, 0.01
      %v1285 = vmul.f32 %v1221, 0.01
      %v1286 = vmul.f32 %v1222, 0.01
      %v1287 = vmul.f32 %v1223, 0.01
      %v1288 = vmul.f32 %v1224, 0.01
      %v1289 = vmul.f32 %v1225, 0.01
      %v1290 = vmul.f32 %v1226, 0.01
      %v1291 = vmul.f32 %v1227, 0.01
      %v1292 = vmul.f32 %v1228, 0.01
      %v1293 = vmul.f32 %v1229, 0.01
      %v1294 = vmul.f32 %v1230, 0.01
      %v1295 = vmul.f32 %v1231, 0.01
      %v1296 = vmax.f32 %v1168, %v1232
      %v1297 = vmax.f32 %v1169, %v1233
      %v1298 = vmax.f32 %v1170, %v1234
      %v1299 = vmax.f32 %v1171, %v1235
      %v1300 = vmax.f32 %v1172, %v1236
      %v1301 = vmax.f32 %v1173, %v1237
      %v1302 = vmax.f32 %v1174, %v1238
      %v1303 = vmax.f32 %v1175, %v1239
      %v1304 = vmax.f32 %v1176, %v1240
      %v1305 = vmax.f32 %v1177, %v1241
      %v1306 = vmax.f32 %v1178, %v1242
      %v1307 = vmax.f32 %v1179, %v1243
      %v1308 = vmax.f32 %v1180, %v1244
      %v1309 = vmax.f32 %v1181, %v1245
      %v1310 = vmax.f32 %v1182, %v1246
      %v1311 = vmax.f32 %v1183, %v1247
      %v1312 = vmax.f32 %v1184, %v1248
      %v1313 = vmax.f32 %v1185, %v1249
      %v1314 = vmax.f32 %v1186, %v1250
      %v1315 = vmax.f32 %v1187, %v1251
      %v1316 = vmax.f32 %v1188, %v1252
      %v1317 = vmax.f32 %v1189, %v1253
      %v1318 = vmax.f32 %v1190, %v1254
      %v1319 = vmax.f32 %v1191, %v1255
      %v1320 = vmax.f32 %v1192, %v1256
      %v1321 = vmax.f32 %v1193, %v1257
      %v1322 = vmax.f32 %v1194, %v1258
      %v1323 = vmax.f32 %v1195, %v1259
      %v1324 = vmax.f32 %v1196, %v1260
      %v1325 = vmax.f32 %v1197, %v1261
      %v1326 = vmax.f32 %v1198, %v1262
      %v1327 = vmax.f32 %v1199, %v1263
      %v1328 = vmax.f32 %v1200, %v1264
      %v1329 = vmax.f32 %v1201, %v1265
      %v1330 = vmax.f32 %v1202, %v1266
      %v1331 = vmax.f32 %v1203, %v1267
      %v1332 = vmax.f32 %v1204, %v1268
      %v1333 = vmax.f32 %v1205, %v1269
      %v1334 = vmax.f32 %v1206, %v1270
      %v1335 = vmax.f32 %v1207, %v1271
      %v1336 = vmax.f32 %v1208, %v1272
      %v1337 = vmax.f32 %v1209, %v1273
      %v1338 = vmax.f32 %v1210, %v1274
      %v1339 = vmax.f32 %v1211, %v1275
      %v1340 = vmax.f32 %v1212, %v1276
      %v1341 = vmax.f32 %v1213, %v1277
      %v1342 = vmax.f32 %v1214, %v1278
      %v1343 = vmax.f32 %v1215, %v1279
      %v1344 = vmax.f32 %v1216, %v1280
      %v1345 = vmax.f32 %v1217, %v1281
      %v1346 = vmax.f32 %v1218, %v1282
      %v1347 = vmax.f32 %v1219, %v1283
      %v1348 = vmax.f32 %v1220, %v1284
      %v1349 = vmax.f32 %v1221, %v1285
      %v1350 = vmax.f32 %v1222, %v1286
      %v1351 = vmax.f32 %v1223, %v1287
      %v1352 = vmax.f32 %v1224, %v1288
      %v1353 = vmax.f32 %v1225, %v1289
      %v1354 = vmax.f32 %v1226, %v1290
      %v1355 = vmax.f32 %v1227, %v1291
      %v1356 = vmax.f32 %v1228, %v1292
      %v1357 = vmax.f32 %v1229, %v1293
      %v1358 = vmax.f32 %v1230, %v1294
      %v1359 = vmax.f32 %v1231, %v1295
      %v1360 = vld [vmem:[%s3] sm:$0xf]
      %v1361 = vld [vmem:[%s3 + $0x4] sm:$0xf]
      %v1362 = vld [vmem:[%s3 + $0x8] sm:$0xf]
      %v1363 = vld [vmem:[%s3 + $0xc] sm:$0xf]
      %v1364 = vld [vmem:[%s3 + $0x10] sm:$0xf]
      %v1365 = vld [vmem:[%s3 + $0x14] sm:$0xf]
      %v1366 = vld [vmem:[%s3 + $0x18] sm:$0xf]
      %v1367 = vld [vmem:[%s3 + $0x1c] sm:$0xf]
      %v1368 = vld [vmem:[%s3 + $0x20] sm:$0xf]
      %v1369 = vld [vmem:[%s3 + $0x24] sm:$0xf]
      %v1370 = vld [vmem:[%s3 + $0x28] sm:$0xf]
      %v1371 = vld [vmem:[%s3 + $0x2c] sm:$0xf]
      %v1372 = vld [vmem:[%s3 + $0x30] sm:$0xf]
      %v1373 = vld [vmem:[%s3 + $0x34] sm:$0xf]
      %v1374 = vld [vmem:[%s3 + $0x38] sm:$0xf]
      %v1375 = vld [vmem:[%s3 + $0x3c] sm:$0xf]
      %v1376 = vpack.c.bf16 %v1300, %v1296
      %v1377 = vpack.c.bf16 %v1301, %v1297
      %v1378 = vpack.c.bf16 %v1302, %v1298
      %v1379 = vpack.c.bf16 %v1303, %v1299
      %v1380 = vpack.c.bf16 %v1308, %v1304
      %v1381 = vpack.c.bf16 %v1309, %v1305
      %v1382 = vpack.c.bf16 %v1310, %v1306
      %v1383 = vpack.c.bf16 %v1311, %v1307
      %v1384 = vpack.c.bf16 %v1316, %v1312
      %v1385 = vpack.c.bf16 %v1317, %v1313
      %v1386 = vpack.c.bf16 %v1318, %v1314
      %v1387 = vpack.c.bf16 %v1319, %v1315
      %v1388 = vpack.c.bf16 %v1324, %v1320
      %v1389 = vpack.c.bf16 %v1325, %v1321
      %v1390 = vpack.c.bf16 %v1326, %v1322
      %v1391 = vpack.c.bf16 %v1327, %v1323
      %v1392 = vpack.c.bf16 %v1332, %v1328
      %v1393 = vpack.c.bf16 %v1333, %v1329
      %v1394 = vpack.c.bf16 %v1334, %v1330
      %v1395 = vpack.c.bf16 %v1335, %v1331
      %v1396 = vpack.c.bf16 %v1340, %v1336
      %v1397 = vpack.c.bf16 %v1341, %v1337
      %v1398 = vpack.c.bf16 %v1342, %v1338
      %v1399 = vpack.c.bf16 %v1343, %v1339
      %v1400 = vpack.c.bf16 %v1348, %v1344
      %v1401 = vpack.c.bf16 %v1349, %v1345
      %v1402 = vpack.c.bf16 %v1350, %v1346
      %v1403 = vpack.c.bf16 %v1351, %v1347
      %v1404 = vpack.c.bf16 %v1356, %v1352
      %v1405 = vpack.c.bf16 %v1357, %v1353
      %v1406 = vpack.c.bf16 %v1358, %v1354
      %v1407 = vpack.c.bf16 %v1359, %v1355
      %v1408 = vld [vmem:[%s4] sm:$0xff]
      %v1409 = vld [vmem:[%s4 + $0x8] sm:$0xff]
      %v1410 = vld [vmem:[%s4 + $0x10] sm:$0xff]
      %v1411 = vld [vmem:[%s4 + $0x18] sm:$0xff]
      %v1412 = vld [vmem:[%s4 + $0x20] sm:$0xff]
      %v1413 = vld [vmem:[%s4 + $0x28] sm:$0xff]
      %v1414 = vld [vmem:[%s4 + $0x30] sm:$0xff]
      %v1415 = vld [vmem:[%s4 + $0x38] sm:$0xff]
      %v1416 = vld [vmem:[%s4 + $0x40] sm:$0xff]
      %v1417 = vld [vmem:[%s4 + $0x48] sm:$0xff]
      %v1418 = vld [vmem:[%s4 + $0x50] sm:$0xff]
      %v1419 = vld [vmem:[%s4 + $0x58] sm:$0xff]
      %v1420 = vld [vmem:[%s4 + $0x60] sm:$0xff]
      %v1421 = vld [vmem:[%s4 + $0x68] sm:$0xff]
      %v1422 = vld [vmem:[%s4 + $0x70] sm:$0xff]
      %v1423 = vld [vmem:[%s4 + $0x78] sm:$0xff]
      %1425 = vset.pattern.permute.xlu0 0
      %1426 = vperm.xlu0 %1425, %v1408
      %v1427 = vpop.permute.xlu0 %1426
      %1430 = vset.pattern.permute.xlu0 0
      %1431 = vperm.xlu0 %1430, %v1409
      %v1432 = vpop.permute.xlu0 %1431
      %1435 = vset.pattern.permute.xlu0 0
      %1436 = vperm.xlu0 %1435, %v1410
      %v1437 = vpop.permute.xlu0 %1436
      %1440 = vset.pattern.permute.xlu0 0
      %1441 = vperm.xlu0 %1440, %v1411
      %v1442 = vpop.permute.xlu0 %1441
      %1445 = vset.pattern.permute.xlu0 0
      %1446 = vperm.xlu0 %1445, %v1412
      %v1447 = vpop.permute.xlu0 %1446
      %1450 = vset.pattern.permute.xlu0 0
      %1451 = vperm.xlu0 %1450, %v1413
      %v1452 = vpop.permute.xlu0 %1451
      %1455 = vset.pattern.permute.xlu0 0
      %1456 = vperm.xlu0 %1455, %v1414
      %v1457 = vpop.permute.xlu0 %1456
      %1460 = vset.pattern.permute.xlu0 0
      %1461 = vperm.xlu0 %1460, %v1415
      %v1462 = vpop.permute.xlu0 %1461
      %1465 = vset.pattern.permute.xlu0 0
      %1466 = vperm.xlu0 %1465, %v1416
      %v1467 = vpop.permute.xlu0 %1466
      %1470 = vset.pattern.permute.xlu0 0
      %1471 = vperm.xlu0 %1470, %v1417
      %v1472 = vpop.permute.xlu0 %1471
      %1475 = vset.pattern.permute.xlu0 0
      %1476 = vperm.xlu0 %1475, %v1418
      %v1477 = vpop.permute.xlu0 %1476
      %1480 = vset.pattern.permute.xlu0 0
      %1481 = vperm.xlu0 %1480, %v1419
      %v1482 = vpop.permute.xlu0 %1481
      %1485 = vset.pattern.permute.xlu0 0
      %1486 = vperm.xlu0 %1485, %v1420
      %v1487 = vpop.permute.xlu0 %1486
      %1490 = vset.pattern.permute.xlu0 0
      %1491 = vperm.xlu0 %1490, %v1421
      %v1492 = vpop.permute.xlu0 %1491
      %1495 = vset.pattern.permute.xlu0 0
      %1496 = vperm.xlu0 %1495, %v1422
      %v1497 = vpop.permute.xlu0 %1496
      %1500 = vset.pattern.permute.xlu0 0
      %1501 = vperm.xlu0 %1500, %v1423
      %v1502 = vpop.permute.xlu0 %1501
      %v1520 = vunpack.c.l.b16 %v1360
      %v1521 = vunpack.c.l.b16 %v1361
      %v1522 = vunpack.c.l.b16 %v1362
      %v1523 = vunpack.c.l.b16 %v1363
      %v1524 = vunpack.c.l.b16 %v1364
      %v1525 = vunpack.c.l.b16 %v1365
      %v1526 = vunpack.c.l.b16 %v1366
      %v1527 = vunpack.c.l.b16 %v1367
      %v1528 = vunpack.c.l.b16 %v1368
      %v1529 = vunpack.c.l.b16 %v1369
      %v1530 = vunpack.c.l.b16 %v1370
      %v1531 = vunpack.c.l.b16 %v1371
      %v1532 = vunpack.c.l.b16 %v1372
      %v1533 = vunpack.c.l.b16 %v1373
      %v1534 = vunpack.c.l.b16 %v1374
      %v1535 = vunpack.c.l.b16 %v1375
      %v1536 = vpack.c.b16 %v1521, %v1520
      %v1537 = vpack.c.b16 %v1523, %v1522
      %v1538 = vpack.c.b16 %v1525, %v1524
      %v1539 = vpack.c.b16 %v1527, %v1526
      %v1540 = vpack.c.b16 %v1529, %v1528
      %v1541 = vpack.c.b16 %v1531, %v1530
      %v1542 = vpack.c.b16 %v1533, %v1532
      %v1543 = vpack.c.b16 %v1535, %v1534
      %1552 = vmatpush.bf16.msra.mxu0 %v1404
      %1553 = vmatpush.bf16.msra.mxu0 %v1400
      %1554 = vmatpush.bf16.msra.mxu0 %v1396
      %1555 = vmatpush.bf16.msra.mxu0 %v1392
      %1556 = vmatpush.bf16.msra.mxu0 %v1388
      %1557 = vmatpush.bf16.msra.mxu0 %v1384
      %1558 = vmatpush.bf16.msra.mxu0 %v1380
      %1559 = vmatpush.bf16.msra.mxu0 %v1376
      %1560 = vmatmul.bf16.gmra.mxu0 %v1536
      %v1561 = vpop.f32.mrf.mxu0
      %v1562 = vadd.f32 %v1427, %v1561
      %v1563 = vpop.f32.mrf.mxu0
      %v1564 = vadd.f32 %v1432, %v1563
      %1565 = vmatmul.bf16.gmra.mxu0 %v1537
      %v1566 = vpop.f32.mrf.mxu0
      %v1567 = vadd.f32 %v1437, %v1566
      %v1568 = vpop.f32.mrf.mxu0
      %v1569 = vadd.f32 %v1442, %v1568
      %1570 = vmatmul.bf16.gmra.mxu0 %v1538
      %v1571 = vpop.f32.mrf.mxu0
      %v1572 = vadd.f32 %v1447, %v1571
      %v1573 = vpop.f32.mrf.mxu0
      %v1574 = vadd.f32 %v1452, %v1573
      %1575 = vmatmul.bf16.gmra.mxu0 %v1539
      %v1576 = vpop.f32.mrf.mxu0
      %v1577 = vadd.f32 %v1457, %v1576
      %v1578 = vpop.f32.mrf.mxu0
      %v1579 = vadd.f32 %v1462, %v1578
      %1580 = vmatmul.bf16.gmra.mxu0 %v1540
      %v1581 = vpop.f32.mrf.mxu0
      %v1582 = vadd.f32 %v1467, %v1581
      %v1583 = vpop.f32.mrf.mxu0
      %v1584 = vadd.f32 %v1472, %v1583
      %1585 = vmatmul.bf16.gmra.mxu0 %v1541
      %v1586 = vpop.f32.mrf.mxu0
      %v1587 = vadd.f32 %v1477, %v1586
      %v1588 = vpop.f32.mrf.mxu0
      %v1589 = vadd.f32 %v1482, %v1588
      %1590 = vmatmul.bf16.gmra.mxu0 %v1542
      %v1591 = vpop.f32.mrf.mxu0
      %v1592 = vadd.f32 %v1487, %v1591
      %v1593 = vpop.f32.mrf.mxu0
      %v1594 = vadd.f32 %v1492, %v1593
      %1595 = vmatmul.bf16.gmra.mxu0 %v1543
      %v1596 = vpop.f32.mrf.mxu0
      %v1597 = vadd.f32 %v1497, %v1596
      %v1598 = vpop.f32.mrf.mxu0
      %v1599 = vadd.f32 %v1502, %v1598
      %1600 = vdwg.mxu0
      %1601 = vmatpush.bf16.msra.mxu0 %v1405
      %1602 = vmatpush.bf16.msra.mxu0 %v1401
      %1603 = vmatpush.bf16.msra.mxu0 %v1397
      %1604 = vmatpush.bf16.msra.mxu0 %v1393
      %1605 = vmatpush.bf16.msra.mxu0 %v1389
      %1606 = vmatpush.bf16.msra.mxu0 %v1385
      %1607 = vmatpush.bf16.msra.mxu0 %v1381
      %1608 = vmatpush.bf16.msra.mxu0 %v1377
      %1609 = vmatmul.bf16.gmra.mxu0 %v1536
      %v1610 = vpop.f32.mrf.mxu0
      %v1611 = vadd.f32 %v1427, %v1610
      %v1612 = vpop.f32.mrf.mxu0
      %v1613 = vadd.f32 %v1432, %v1612
      %1614 = vmatmul.bf16.gmra.mxu0 %v1537
      %v1615 = vpop.f32.mrf.mxu0
      %v1616 = vadd.f32 %v1437, %v1615
      %v1617 = vpop.f32.mrf.mxu0
      %v1618 = vadd.f32 %v1442, %v1617
      %1619 = vmatmul.bf16.gmra.mxu0 %v1538
      %v1620 = vpop.f32.mrf.mxu0
      %v1621 = vadd.f32 %v1447, %v1620
      %v1622 = vpop.f32.mrf.mxu0
      %v1623 = vadd.f32 %v1452, %v1622
      %1624 = vmatmul.bf16.gmra.mxu0 %v1539
      %v1625 = vpop.f32.mrf.mxu0
      %v1626 = vadd.f32 %v1457, %v1625
      %v1627 = vpop.f32.mrf.mxu0
      %v1628 = vadd.f32 %v1462, %v1627
      %1629 = vmatmul.bf16.gmra.mxu0 %v1540
      %v1630 = vpop.f32.mrf.mxu0
      %v1631 = vadd.f32 %v1467, %v1630
      %v1632 = vpop.f32.mrf.mxu0
      %v1633 = vadd.f32 %v1472, %v1632
      %1634 = vmatmul.bf16.gmra.mxu0 %v1541
      %v1635 = vpop.f32.mrf.mxu0
      %v1636 = vadd.f32 %v1477, %v1635
      %v1637 = vpop.f32.mrf.mxu0
      %v1638 = vadd.f32 %v1482, %v1637
      %1639 = vmatmul.bf16.gmra.mxu0 %v1542
      %v1640 = vpop.f32.mrf.mxu0
      %v1641 = vadd.f32 %v1487, %v1640
      %v1642 = vpop.f32.mrf.mxu0
      %v1643 = vadd.f32 %v1492, %v1642
      %1644 = vmatmul.bf16.gmra.mxu0 %v1543
      %v1645 = vpop.f32.mrf.mxu0
      %v1646 = vadd.f32 %v1497, %v1645
      %v1647 = vpop.f32.mrf.mxu0
      %v1648 = vadd.f32 %v1502, %v1647
      %1649 = vdwg.mxu0
      %1650 = vmatpush.bf16.msra.mxu0 %v1406
      %1651 = vmatpush.bf16.msra.mxu0 %v1402
      %1652 = vmatpush.bf16.msra.mxu0 %v1398
      %1653 = vmatpush.bf16.msra.mxu0 %v1394
      %1654 = vmatpush.bf16.msra.mxu0 %v1390
      %1655 = vmatpush.bf16.msra.mxu0 %v1386
      %1656 = vmatpush.bf16.msra.mxu0 %v1382
      %1657 = vmatpush.bf16.msra.mxu0 %v1378
      %1658 = vmatmul.bf16.gmra.mxu0 %v1536
      %v1659 = vpop.f32.mrf.mxu0
      %v1660 = vadd.f32 %v1427, %v1659
      %v1661 = vpop.f32.mrf.mxu0
      %v1662 = vadd.f32 %v1432, %v1661
      %1663 = vmatmul.bf16.gmra.mxu0 %v1537
      %v1664 = vpop.f32.mrf.mxu0
      %v1665 = vadd.f32 %v1437, %v1664
      %v1666 = vpop.f32.mrf.mxu0
      %v1667 = vadd.f32 %v1442, %v1666
      %1668 = vmatmul.bf16.gmra.mxu0 %v1538
      %v1669 = vpop.f32.mrf.mxu0
      %v1670 = vadd.f32 %v1447, %v1669
      %v1671 = vpop.f32.mrf.mxu0
      %v1672 = vadd.f32 %v1452, %v1671
      %1673 = vmatmul.bf16.gmra.mxu0 %v1539
      %v1674 = vpop.f32.mrf.mxu0
      %v1675 = vadd.f32 %v1457, %v1674
      %v1676 = vpop.f32.mrf.mxu0
      %v1677 = vadd.f32 %v1462, %v1676
      %1678 = vmatmul.bf16.gmra.mxu0 %v1540
      %v1679 = vpop.f32.mrf.mxu0
      %v1680 = vadd.f32 %v1467, %v1679
      %v1681 = vpop.f32.mrf.mxu0
      %v1682 = vadd.f32 %v1472, %v1681
      %1683 = vmatmul.bf16.gmra.mxu0 %v1541
      %v1684 = vpop.f32.mrf.mxu0
      %v1685 = vadd.f32 %v1477, %v1684
      %v1686 = vpop.f32.mrf.mxu0
      %v1687 = vadd.f32 %v1482, %v1686
      %1688 = vmatmul.bf16.gmra.mxu0 %v1542
      %v1689 = vpop.f32.mrf.mxu0
      %v1690 = vadd.f32 %v1487, %v1689
      %v1691 = vpop.f32.mrf.mxu0
      %v1692 = vadd.f32 %v1492, %v1691
      %1693 = vmatmul.bf16.gmra.mxu0 %v1543
      %v1694 = vpop.f32.mrf.mxu0
      %v1695 = vadd.f32 %v1497, %v1694
      %v1696 = vpop.f32.mrf.mxu0
      %v1697 = vadd.f32 %v1502, %v1696
      %1698 = vdwg.mxu0
      %1699 = vmatpush.bf16.msra.mxu0 %v1407
      %1700 = vmatpush.bf16.msra.mxu0 %v1403
      %1701 = vmatpush.bf16.msra.mxu0 %v1399
      %1702 = vmatpush.bf16.msra.mxu0 %v1395
      %1703 = vmatpush.bf16.msra.mxu0 %v1391
      %1704 = vmatpush.bf16.msra.mxu0 %v1387
      %1705 = vmatpush.bf16.msra.mxu0 %v1383
      %1706 = vmatpush.bf16.msra.mxu0 %v1379
      %1707 = vmatmul.bf16.gmra.mxu0 %v1536
      %v1708 = vpop.f32.mrf.mxu0
      %v1709 = vadd.f32 %v1427, %v1708
      %v1710 = vpop.f32.mrf.mxu0
      %v1711 = vadd.f32 %v1432, %v1710
      %1712 = vmatmul.bf16.gmra.mxu0 %v1537
      %v1713 = vpop.f32.mrf.mxu0
      %v1714 = vadd.f32 %v1437, %v1713
      %v1715 = vpop.f32.mrf.mxu0
      %v1716 = vadd.f32 %v1442, %v1715
      %1717 = vmatmul.bf16.gmra.mxu0 %v1538
      %v1718 = vpop.f32.mrf.mxu0
      %v1719 = vadd.f32 %v1447, %v1718
      %v1720 = vpop.f32.mrf.mxu0
      %v1721 = vadd.f32 %v1452, %v1720
      %1722 = vmatmul.bf16.gmra.mxu0 %v1539
      %v1723 = vpop.f32.mrf.mxu0
      %v1724 = vadd.f32 %v1457, %v1723
      %v1725 = vpop.f32.mrf.mxu0
      %v1726 = vadd.f32 %v1462, %v1725
      %1727 = vmatmul.bf16.gmra.mxu0 %v1540
      %v1728 = vpop.f32.mrf.mxu0
      %v1729 = vadd.f32 %v1467, %v1728
      %v1730 = vpop.f32.mrf.mxu0
      %v1731 = vadd.f32 %v1472, %v1730
      %1732 = vmatmul.bf16.gmra.mxu0 %v1541
      %v1733 = vpop.f32.mrf.mxu0
      %v1734 = vadd.f32 %v1477, %v1733
      %v1735 = vpop.f32.mrf.mxu0
      %v1736 = vadd.f32 %v1482, %v1735
      %1737 = vmatmul.bf16.gmra.mxu0 %v1542
      %v1738 = vpop.f32.mrf.mxu0
      %v1739 = vadd.f32 %v1487, %v1738
      %v1740 = vpop.f32.mrf.mxu0
      %v1741 = vadd.f32 %v1492, %v1740
      %1742 = vmatmul.bf16.gmra.mxu0 %v1543
      %v1743 = vpop.f32.mrf.mxu0
      %v1744 = vadd.f32 %v1497, %v1743
      %v1745 = vpop.f32.mrf.mxu0
      %v1746 = vadd.f32 %v1502, %v1745
      %1747 = vdwg.mxu0
      %v1748 = vmul.f32 %v1562, 0.01
      %v1749 = vmul.f32 %v1611, 0.01
      %v1750 = vmul.f32 %v1660, 0.01
      %v1751 = vmul.f32 %v1709, 0.01
      %v1752 = vmul.f32 %v1564, 0.01
      %v1753 = vmul.f32 %v1613, 0.01
      %v1754 = vmul.f32 %v1662, 0.01
      %v1755 = vmul.f32 %v1711, 0.01
      %v1756 = vmul.f32 %v1567, 0.01
      %v1757 = vmul.f32 %v1616, 0.01
      %v1758 = vmul.f32 %v1665, 0.01
      %v1759 = vmul.f32 %v1714, 0.01
      %v1760 = vmul.f32 %v1569, 0.01
      %v1761 = vmul.f32 %v1618, 0.01
      %v1762 = vmul.f32 %v1667, 0.01
      %v1763 = vmul.f32 %v1716, 0.01
      %v1764 = vmul.f32 %v1572, 0.01
      %v1765 = vmul.f32 %v1621, 0.01
      %v1766 = vmul.f32 %v1670, 0.01
      %v1767 = vmul.f32 %v1719, 0.01
      %v1768 = vmul.f32 %v1574, 0.01
      %v1769 = vmul.f32 %v1623, 0.01
      %v1770 = vmul.f32 %v1672, 0.01
      %v1771 = vmul.f32 %v1721, 0.01
      %v1772 = vmul.f32 %v1577, 0.01
      %v1773 = vmul.f32 %v1626, 0.01
      %v1774 = vmul.f32 %v1675, 0.01
      %v1775 = vmul.f32 %v1724, 0.01
      %v1776 = vmul.f32 %v1579, 0.01
      %v1777 = vmul.f32 %v1628, 0.01
      %v1778 = vmul.f32 %v1677, 0.01
      %v1779 = vmul.f32 %v1726, 0.01
      %v1780 = vmul.f32 %v1582, 0.01
      %v1781 = vmul.f32 %v1631, 0.01
      %v1782 = vmul.f32 %v1680, 0.01
      %v1783 = vmul.f32 %v1729, 0.01
      %v1784 = vmul.f32 %v1584, 0.01
      %v1785 = vmul.f32 %v1633, 0.01
      %v1786 = vmul.f32 %v1682, 0.01
      %v1787 = vmul.f32 %v1731, 0.01
      %v1788 = vmul.f32 %v1587, 0.01
      %v1789 = vmul.f32 %v1636, 0.01
      %v1790 = vmul.f32 %v1685, 0.01
      %v1791 = vmul.f32 %v1734, 0.01
      %v1792 = vmul.f32 %v1589, 0.01
      %v1793 = vmul.f32 %v1638, 0.01
      %v1794 = vmul.f32 %v1687, 0.01
      %v1795 = vmul.f32 %v1736, 0.01
      %v1796 = vmul.f32 %v1592, 0.01
      %v1797 = vmul.f32 %v1641, 0.01
      %v1798 = vmul.f32 %v1690, 0.01
      %v1799 = vmul.f32 %v1739, 0.01
      %v1800 = vmul.f32 %v1594, 0.01
      %v1801 = vmul.f32 %v1643, 0.01
      %v1802 = vmul.f32 %v1692, 0.01
      %v1803 = vmul.f32 %v1741, 0.01
      %v1804 = vmul.f32 %v1597, 0.01
      %v1805 = vmul.f32 %v1646, 0.01
      %v1806 = vmul.f32 %v1695, 0.01
      %v1807 = vmul.f32 %v1744, 0.01
      %v1808 = vmul.f32 %v1599, 0.01
      %v1809 = vmul.f32 %v1648, 0.01
      %v1810 = vmul.f32 %v1697, 0.01
      %v1811 = vmul.f32 %v1746, 0.01
      %v1812 = vmax.f32 %v1562, %v1748
      %v1813 = vmax.f32 %v1611, %v1749
      %v1814 = vmax.f32 %v1660, %v1750
      %v1815 = vmax.f32 %v1709, %v1751
      %v1816 = vmax.f32 %v1564, %v1752
      %v1817 = vmax.f32 %v1613, %v1753
      %v1818 = vmax.f32 %v1662, %v1754
      %v1819 = vmax.f32 %v1711, %v1755
      %v1820 = vmax.f32 %v1567, %v1756
      %v1821 = vmax.f32 %v1616, %v1757
      %v1822 = vmax.f32 %v1665, %v1758
      %v1823 = vmax.f32 %v1714, %v1759
      %v1824 = vmax.f32 %v1569, %v1760
      %v1825 = vmax.f32 %v1618, %v1761
      %v1826 = vmax.f32 %v1667, %v1762
      %v1827 = vmax.f32 %v1716, %v1763
      %v1828 = vmax.f32 %v1572, %v1764
      %v1829 = vmax.f32 %v1621, %v1765
      %v1830 = vmax.f32 %v1670, %v1766
      %v1831 = vmax.f32 %v1719, %v1767
      %v1832 = vmax.f32 %v1574, %v1768
      %v1833 = vmax.f32 %v1623, %v1769
      %v1834 = vmax.f32 %v1672, %v1770
      %v1835 = vmax.f32 %v1721, %v1771
      %v1836 = vmax.f32 %v1577, %v1772
      %v1837 = vmax.f32 %v1626, %v1773
      %v1838 = vmax.f32 %v1675, %v1774
      %v1839 = vmax.f32 %v1724, %v1775
      %v1840 = vmax.f32 %v1579, %v1776
      %v1841 = vmax.f32 %v1628, %v1777
      %v1842 = vmax.f32 %v1677, %v1778
      %v1843 = vmax.f32 %v1726, %v1779
      %v1844 = vmax.f32 %v1582, %v1780
      %v1845 = vmax.f32 %v1631, %v1781
      %v1846 = vmax.f32 %v1680, %v1782
      %v1847 = vmax.f32 %v1729, %v1783
      %v1848 = vmax.f32 %v1584, %v1784
      %v1849 = vmax.f32 %v1633, %v1785
      %v1850 = vmax.f32 %v1682, %v1786
      %v1851 = vmax.f32 %v1731, %v1787
      %v1852 = vmax.f32 %v1587, %v1788
      %v1853 = vmax.f32 %v1636, %v1789
      %v1854 = vmax.f32 %v1685, %v1790
      %v1855 = vmax.f32 %v1734, %v1791
      %v1856 = vmax.f32 %v1589, %v1792
      %v1857 = vmax.f32 %v1638, %v1793
      %v1858 = vmax.f32 %v1687, %v1794
      %v1859 = vmax.f32 %v1736, %v1795
      %v1860 = vmax.f32 %v1592, %v1796
      %v1861 = vmax.f32 %v1641, %v1797
      %v1862 = vmax.f32 %v1690, %v1798
      %v1863 = vmax.f32 %v1739, %v1799
      %v1864 = vmax.f32 %v1594, %v1800
      %v1865 = vmax.f32 %v1643, %v1801
      %v1866 = vmax.f32 %v1692, %v1802
      %v1867 = vmax.f32 %v1741, %v1803
      %v1868 = vmax.f32 %v1597, %v1804
      %v1869 = vmax.f32 %v1646, %v1805
      %v1870 = vmax.f32 %v1695, %v1806
      %v1871 = vmax.f32 %v1744, %v1807
      %v1872 = vmax.f32 %v1599, %v1808
      %v1873 = vmax.f32 %v1648, %v1809
      %v1874 = vmax.f32 %v1697, %v1810
      %v1875 = vmax.f32 %v1746, %v1811
      %v1876 = vld [vmem:[%s5] sm:$0x1]
      %v1877 = vpack.c.bf16 %v1876, %v1876
      %v1878 = vpack.c.bf16 %v1816, %v1812
      %v1879 = vpack.c.bf16 %v1817, %v1813
      %v1880 = vpack.c.bf16 %v1818, %v1814
      %v1881 = vpack.c.bf16 %v1819, %v1815
      %v1882 = vpack.c.bf16 %v1824, %v1820
      %v1883 = vpack.c.bf16 %v1825, %v1821
      %v1884 = vpack.c.bf16 %v1826, %v1822
      %v1885 = vpack.c.bf16 %v1827, %v1823
      %v1886 = vpack.c.bf16 %v1832, %v1828
      %v1887 = vpack.c.bf16 %v1833, %v1829
      %v1888 = vpack.c.bf16 %v1834, %v1830
      %v1889 = vpack.c.bf16 %v1835, %v1831
      %v1890 = vpack.c.bf16 %v1840, %v1836
      %v1891 = vpack.c.bf16 %v1841, %v1837
      %v1892 = vpack.c.bf16 %v1842, %v1838
      %v1893 = vpack.c.bf16 %v1843, %v1839
      %v1894 = vpack.c.bf16 %v1848, %v1844
      %v1895 = vpack.c.bf16 %v1849, %v1845
      %v1896 = vpack.c.bf16 %v1850, %v1846
      %v1897 = vpack.c.bf16 %v1851, %v1847
      %v1898 = vpack.c.bf16 %v1856, %v1852
      %v1899 = vpack.c.bf16 %v1857, %v1853
      %v1900 = vpack.c.bf16 %v1858, %v1854
      %v1901 = vpack.c.bf16 %v1859, %v1855
      %v1902 = vpack.c.bf16 %v1864, %v1860
      %v1903 = vpack.c.bf16 %v1865, %v1861
      %v1904 = vpack.c.bf16 %v1866, %v1862
      %v1905 = vpack.c.bf16 %v1867, %v1863
      %v1906 = vpack.c.bf16 %v1872, %v1868
      %v1907 = vpack.c.bf16 %v1873, %v1869
      %v1908 = vpack.c.bf16 %v1874, %v1870
      %v1909 = vpack.c.bf16 %v1875, %v1871
      %v1910 = vld [vmem:[#allocation2] sm:$0x1]
      %1912 = vset.pattern.permute.xlu0 0
      %1913 = vperm.xlu0 %1912, %v1910
      %v1914 = vpop.permute.xlu0 %1913
      %v1916 = vperm.slane %v1914, 0
      %1917 = vmatpush.bf16.msra.mxu0 %v1906
      %1918 = vmatpush.bf16.msra.mxu0 %v1902
      %1919 = vmatpush.bf16.msra.mxu0 %v1898
      %1920 = vmatpush.bf16.msra.mxu0 %v1894
      %1921 = vmatpush.bf16.msra.mxu0 %v1890
      %1922 = vmatpush.bf16.msra.mxu0 %v1886
      %1923 = vmatpush.bf16.msra.mxu0 %v1882
      %1924 = vmatpush.bf16.msra.mxu0 %v1878
      %1925 = vmatmul.bf16.gmra.mxu0 %v1877
      %v1926 = vpop.f32.mrf.mxu0
      %v1927 = vadd.f32 %v1916, %v1926
      %v1928 = vpop.f32.mrf.mxu0
      %1929 = vdwg.mxu0
      %1930 = vmatpush.bf16.msra.mxu0 %v1907
      %1931 = vmatpush.bf16.msra.mxu0 %v1903
      %1932 = vmatpush.bf16.msra.mxu0 %v1899
      %1933 = vmatpush.bf16.msra.mxu0 %v1895
      %1934 = vmatpush.bf16.msra.mxu0 %v1891
      %1935 = vmatpush.bf16.msra.mxu0 %v1887
      %1936 = vmatpush.bf16.msra.mxu0 %v1883
      %1937 = vmatpush.bf16.msra.mxu0 %v1879
      %1938 = vmatmul.bf16.gmra.mxu0 %v1877
      %v1939 = vpop.f32.mrf.mxu0
      %v1940 = vadd.f32 %v1916, %v1939
      %v1941 = vpop.f32.mrf.mxu0
      %1942 = vdwg.mxu0
      %1943 = vmatpush.bf16.msra.mxu0 %v1908
      %1944 = vmatpush.bf16.msra.mxu0 %v1904
      %1945 = vmatpush.bf16.msra.mxu0 %v1900
      %1946 = vmatpush.bf16.msra.mxu0 %v1896
      %1947 = vmatpush.bf16.msra.mxu0 %v1892
      %1948 = vmatpush.bf16.msra.mxu0 %v1888
      %1949 = vmatpush.bf16.msra.mxu0 %v1884
      %1950 = vmatpush.bf16.msra.mxu0 %v1880
      %1951 = vmatmul.bf16.gmra.mxu0 %v1877
      %v1952 = vpop.f32.mrf.mxu0
      %v1953 = vadd.f32 %v1916, %v1952
      %v1954 = vpop.f32.mrf.mxu0
      %1955 = vdwg.mxu0
      %1956 = vmatpush.bf16.msra.mxu0 %v1909
      %1957 = vmatpush.bf16.msra.mxu0 %v1905
      %1958 = vmatpush.bf16.msra.mxu0 %v1901
      %1959 = vmatpush.bf16.msra.mxu0 %v1897
      %1960 = vmatpush.bf16.msra.mxu0 %v1893
      %1961 = vmatpush.bf16.msra.mxu0 %v1889
      %1962 = vmatpush.bf16.msra.mxu0 %v1885
      %1963 = vmatpush.bf16.msra.mxu0 %v1881
      %1964 = vmatmul.bf16.gmra.mxu0 %v1877
      %v1965 = vpop.f32.mrf.mxu0
      %v1966 = vadd.f32 %v1916, %v1965
      %v1967 = vpop.f32.mrf.mxu0
      %1968 = vdwg.mxu0
      %v1969 = vmax.f32 %v1927, -60.0
      %v1970 = vmax.f32 %v1940, -60.0
      %v1971 = vmax.f32 %v1953, -60.0
      %v1972 = vmax.f32 %v1966, -60.0
      %v1973 = vmin.f32 %v1969, 60.0
      %v1974 = vmin.f32 %v1970, 60.0
      %v1975 = vmin.f32 %v1971, 60.0
      %v1976 = vmin.f32 %v1972, 60.0
      %v1977 = vsub.f32 0.0, %v1973
      %v1978 = vsub.f32 0.0, %v1974
      %v1979 = vsub.f32 0.0, %v1975
      %v1980 = vsub.f32 0.0, %v1976
      %v1981 = vmul.f32 %v1977, 1.442695
      %v1982 = vpow.pop %v1981
      %v1983 = vmul.f32 %v1978, 1.442695
      %v1984 = vpow.pop %v1983
      %v1985 = vmul.f32 %v1979, 1.442695
      %v1986 = vpow.pop %v1985
      %v1987 = vmul.f32 %v1980, 1.442695
      %v1988 = vpow.pop %v1987
      %v1989 = vadd.f32 %v1982, 1.0
      %v1990 = vadd.f32 %v1984, 1.0
      %v1991 = vadd.f32 %v1986, 1.0
      %v1992 = vadd.f32 %v1988, 1.0
      %v1993 = vrcp.pop %v1989
      %v1994 = vrcp.pop %v1990
      %v1995 = vrcp.pop %v1991
      %v1996 = vrcp.pop %v1992
      %v1997 = vsub.f32 1.0, %v1993
      %v1998 = vsub.f32 1.0, %v1994
      %v1999 = vsub.f32 1.0, %v1995
      %v2000 = vsub.f32 1.0, %v1996
      %v2005 = vrot.slane %v1997, 7
      %v2006 = vrot.slane %v1998, 7
      %v2007 = vrot.slane %v1999, 7
      %v2008 = vrot.slane %v2000, 7
      %vm2013 = vcmask 1040384
      %v2014 = vsel %vm2013, %v1993, %v2005
      %v2015 = vsel %vm2013, %v1994, %v2006
      %v2016 = vsel %vm2013, %v1995, %v2007
      %v2017 = vsel %vm2013, %v1996, %v2008
      %v2022 = vrot.slane %v2015, 6
      %v2023 = vrot.slane %v2016, 4
      %v2024 = vrot.slane %v2017, 2
      %vm2025 = vcmask 1041408
      %v2026 = vsel %vm2025, %v2014, %v2022
      %vm2027 = vcmask 1045508
      %v2028 = vsel %vm2027, %v2023, %v2024
      %vm2029 = vcmask 1043456
      %v2030 = vsel %vm2029, %v2026, %v2028
      %2032 = vst [vmem:[%s282] sm:$0xff] %v2030
      %s2033 = smul.u32 4, %s20
      %p2034 = scmp.lt.s32.totalorder %s2033, 7
      %s2035 = scalar_select %p2034, %s2033, 7
      %s2036 = smul.addr %s2035, 2
      %s2037 = scalar_lea.vmem %s7, %s2036
      // Predicated region
      $region49: #{actor_forward.1} parent=47 // pred_check
        %p2038 = pneg %p190
      $region50: #{actor_forward.1} parent=47 // pred_check_branch
        %2040 = sbr.rel (%p2038) target = $region52
      $region51: #{actor_forward.1} parent=47 // pred_region
        %s2041 = smul.u32 4, %s20
      $region52: #{actor_forward.1} parent=47 // pred_fallthru
        _
    $region48: #{actor_forward.1} parent=5 // pred_fallthru
      _
    %p2042 = scmp.le.s32.totalorder 2, %s15
    // Predicated region
    $region53: #{actor_forward.1} parent=5 // pred_check
      %p2043 = pneg %p2042
    $region54: #{actor_forward.1} parent=5 // pred_check_branch
      %2045 = sbr.rel (%p2043) target = $region56
    $region55: #{actor_forward.1} parent=5 // pred_region
      %s2046 = ssub.s32 %s15, 2
      // Predicated region
      $region57: #{actor_forward.1} parent=55 // pred_check
        %p2047 = pneg %p196
      $region58: #{actor_forward.1} parent=55 // pred_check_branch
        %2049 = sbr.rel (%p2047) target = $region60
      $region59: #{actor_forward.1} parent=55 // pred_region
        %s2050 = smul.u32 4, %s21
        %p2051 = scmp.lt.s32.totalorder %s2050, 7
        %s2052 = scalar_select %p2051, %s2050, 7
        %s2053 = smul.addr %s2052, 2
        %s2054 = scalar_lea.vmem %s7, %s2053
      $region60: #{actor_forward.1} parent=55 // pred_fallthru
        _
    $region56: #{actor_forward.1} parent=5 // pred_fallthru
      _
  $region6: #{actor_forward.1} parent=0 // loop_footer
    %s19 = sadd.s32 1, %s15
  $region7: #{actor_forward.1} parent=0 // loop_footer_branch
    %14 = sbr.rel target = $region3
  $region8: #{actor_forward.1} parent=0 // loop_exit
    _

</llo_original>
